<compile_context>
chip_gen: v7x
topology: tpu7x:2x2x1
jax: 0.10.0
libtpu: 0.0.40
codegen_flags: <defaults>
</compile_context>

<pallas_src>
import functools

import jax
import jax.numpy as jnp
from jax.experimental import pallas as pl
from jax.experimental.pallas import tpu as pltpu

NEG_SLOPE = 0.01          # nn.LeakyReLU default negative_slope
LIN3_PAD = 128            # lin3 outputs padded to one full lane tile


def _vmem_spec():
    return pl.BlockSpec(memory_space=pltpu.MemorySpace.VMEM)


# ---------------------------------------------------------------------------
# In-kernel helpers (operate on loaded jnp values).
# ---------------------------------------------------------------------------
def _conv3x3_ci1(inp, w, b):
    """3x3 valid conv, stride 1, single input channel (9 broadcast FMAs).

    inp [B,H,W,1], w [3,3,1,Co] (HWIO), b [1,Co]."""
    B, H, W, _ = inp.shape
    Co = w.shape[-1]
    Ho, Wo = H - 2, W - 2
    acc = jnp.zeros((B, Ho, Wo, Co), jnp.float32)
    for kh in range(3):
        for kw in range(3):
            patch = inp[:, kh:kh + Ho, kw:kw + Wo, :]      # [B,Ho,Wo,1]
            acc = acc + patch * w[kh, kw, 0]                # bcast over Co lanes
    return acc + b


def _conv3x3_mxu(inp, w, b):
    """3x3 valid conv, stride 1, channel contraction on the MXU.

    One batched matmul per filter tap (9 total).  inp [B,H,W,Ci],
    w [3,3,Ci,Co] (HWIO), b [1,Co].  The (B,Ho) leading dims are merged
    (layout-safe: the minor (Wo,Ci) dims are untouched) so each tap is a
    [B*Ho]-batched [Wo,Ci]x[Ci,Co] matmul with f32 accumulation."""
    B, H, W, Ci = inp.shape
    Co = w.shape[-1]
    Ho, Wo = H - 2, W - 2
    G = B * Ho
    acc = jnp.zeros((G, Wo, Co), jnp.float32)
    for kh in range(3):
        for kw in range(3):
            patch = inp[:, kh:kh + Ho, kw:kw + Wo, :].reshape(G, Wo, Ci)
            w_tap = jnp.broadcast_to(w[kh, kw], (G, Ci, Co))
            acc = acc + jnp.einsum("gwc,gco->gwo", patch, w_tap,
                                   preferred_element_type=jnp.float32)
    return (acc + b).reshape(B, Ho, Wo, Co)


def _maxpool3x3_s1(inp):
    """3x3 max-pool, stride 1, valid.  inp [B,H,W,C]."""
    B, H, W, C = inp.shape
    Ho, Wo = H - 2, W - 2
    out = inp[:, 0:Ho, 0:Wo, :]
    for ph in range(3):
        for pw in range(3):
            if ph == 0 and pw == 0:
                continue
            out = jnp.maximum(out, inp[:, ph:ph + Ho, pw:pw + Wo, :])
    return out


def _leaky_relu(x):
    return jnp.where(x >= 0, x, NEG_SLOPE * x)


# ---------------------------------------------------------------------------
# Fused kernel: conv1->pool1->conv2->pool2->flatten->MLP->Softmax(dim=0)
# One grid step == one independent batch group; weights are VMEM-resident
# across groups (constant index_maps).
# ---------------------------------------------------------------------------
def _fused_kernel(x_ref, w1_ref, b1_ref, w2_ref, b2_ref,
                  w3_ref, b3_ref, w4_ref, b4_ref, w5_ref, b5_ref,
                  out_ref, flat_buf):
    # --- conv / pool stage (dropout1/2 == identity at inference) ----------
    p1 = _maxpool3x3_s1(_conv3x3_ci1(x_ref[...], w1_ref[...], b1_ref[...]))
    p2 = _maxpool3x3_s1(_conv3x3_mxu(p1, w2_ref[...], b2_ref[...]))

    # --- flatten into a lane-dense [gb, feat] slab in (h, w, c) order ------
    # (lin1 weight rows were permuted in the wrapper to match this order).
    gb, Hc, Wc, C2 = p2.shape
    for h in range(Hc):
        for ww in range(Wc):
            j = (h * Wc + ww) * C2
            flat_buf[:, j:j + C2] = p2[:, h, ww, :]
    # TODO(synk): collapse to Hc wide stores via a [gb,Wc,C2]->[gb,Wc*C2]
    # minor-dim relayout once that reshape lowers reliably on Mosaic.
    flat = flat_buf[...].astype(jnp.bfloat16)              # [gb, feat]

    # --- MLP (bf16 weights, f32 accumulation; dropout3/4 == identity) -----
    h1 = _leaky_relu(jnp.dot(flat, w3_ref[...],
                             preferred_element_type=jnp.float32) + b3_ref[...])
    h2 = _leaky_relu(jnp.dot(h1.astype(jnp.bfloat16), w4_ref[...],
                             preferred_element_type=jnp.float32) + b4_ref[...])
    logits = jnp.dot(h2.astype(jnp.bfloat16), w5_ref[...],
                     preferred_element_type=jnp.float32) + b5_ref[...]  # [gb,128]

    # --- nn.Softmax(dim=0): normalize over the batch(-group) axis, exact ---
    m = jnp.max(logits, axis=0, keepdims=True)
    e = jnp.exp(logits - m)
    probs = e / jnp.sum(e, axis=0, keepdims=True)
    out_ref[0] = probs                                     # lane-dense [gb,128]


# ---------------------------------------------------------------------------
# Early-exit kernels (out == -2 / out == -1): only emit what is returned.
# ---------------------------------------------------------------------------
def _conv1_stage_kernel(x_ref, w1_ref, b1_ref, o_ref):
    o_ref[...] = _maxpool3x3_s1(
        _conv3x3_ci1(x_ref[...], w1_ref[...], b1_ref[...]))


def _conv2_stage_kernel(x_ref, w1_ref, b1_ref, w2_ref, b2_ref, o_ref):
    p1 = _maxpool3x3_s1(_conv3x3_ci1(x_ref[...], w1_ref[...], b1_ref[...]))
    o_ref[...] = _maxpool3x3_s1(_conv3x3_mxu(p1, w2_ref[...], b2_ref[...]))


# ---------------------------------------------------------------------------
# Parameter initialization (deterministic, PyTorch-convention shapes).
# ---------------------------------------------------------------------------
def init_params(input_shape=(16, 16), n_filters=16, key=jax.random.PRNGKey(0)):
    H, W = input_shape
    c2 = n_filters // 2
    feat = c2 * (H - 8) * (W - 8)
    hidden = 32 * 32

    ks = jax.random.split(key, 10)
    return {
        "conv1_w": jax.random.normal(ks[0], (n_filters, 1, 3, 3), jnp.float32) * 0.1,
        "conv1_b": jax.random.normal(ks[1], (n_filters,), jnp.float32) * 0.1,
        "conv2_w": jax.random.normal(ks[2], (c2, n_filters, 3, 3), jnp.float32) * 0.05,
        "conv2_b": jax.random.normal(ks[3], (c2,), jnp.float32) * 0.05,
        "lin1_w": jax.random.normal(ks[4], (hidden, feat), jnp.float32) * 0.02,
        "lin1_b": jax.random.normal(ks[5], (hidden,), jnp.float32) * 0.02,
        "lin2_w": jax.random.normal(ks[6], (hidden, hidden), jnp.float32) * 0.02,
        "lin2_b": jax.random.normal(ks[7], (hidden,), jnp.float32) * 0.02,
        "lin3_w": jax.random.normal(ks[8], (2, hidden), jnp.float32) * 0.02,
        "lin3_b": jax.random.normal(ks[9], (2,), jnp.float32) * 0.02,
    }


# ---------------------------------------------------------------------------
# Forward wrapper (matches PneumoniaModel.forward, including `out` early exits)
# ---------------------------------------------------------------------------
@functools.partial(jax.jit, static_argnames=("out", "group_size"))
def pneumonia_forward(x_nchw, params, out=0, group_size=None):
    """Matches PneumoniaModel.forward(x, out) at inference.

    `group_size` is a serving knob: the batch is split into independent groups
    of that size and Softmax(dim=0) is applied per group (== calling the
    module once per group), with the MLP weights fetched to VMEM only once.
    Default None -> one group == the whole batch (exact module semantics)."""
    B, _, H, W = x_nchw.shape
    c1 = params["conv1_w"].shape[0]
    c2 = params["conv2_w"].shape[0]
    hidden = params["lin1_w"].shape[0]
    Hc, Wc = H - 8, W - 8
    feat = c2 * Hc * Wc

    # --- PyTorch conventions -> kernel layouts (plain-JAX glue) -----------
    x_nhwc = jnp.transpose(x_nchw, (0, 2, 3, 1)).astype(jnp.float32)
    w1 = jnp.transpose(params["conv1_w"], (2, 3, 1, 0))       # HWIO [3,3,1,C1]
    b1 = params["conv1_b"].reshape(1, -1).astype(jnp.float32)
    w2 = jnp.transpose(params["conv2_w"], (2, 3, 1, 0))       # HWIO [3,3,C1,C2]
    b2 = params["conv2_b"].reshape(1, -1).astype(jnp.float32)

    if out == -2:
        p1 = pl.pallas_call(
            _conv1_stage_kernel,
            out_shape=jax.ShapeDtypeStruct((B, H - 4, W - 4, c1), jnp.float32),
            in_specs=[_vmem_spec()] * 3,
            out_specs=_vmem_spec(),
        )(x_nhwc, w1, b1)
        return jnp.transpose(p1, (0, 3, 1, 2))                # back to NCHW

    if out == -1:
        p2 = pl.pallas_call(
            _conv2_stage_kernel,
            out_shape=jax.ShapeDtypeStruct((B, H - 8, W - 8, c2), jnp.float32),
            in_specs=[_vmem_spec()] * 5,
            out_specs=_vmem_spec(),
        )(x_nhwc, w1, b1, w2, b2)
        return jnp.transpose(p2, (0, 3, 1, 2))                # back to NCHW

    gb = B if group_size is None else int(group_size)
    if B % gb != 0:
        raise ValueError("batch must be divisible by group_size")
    G = B // gb

    # lin1 weight: fold the PyTorch NCHW flatten order (c,h,w) into a row
    # permutation so the kernel can flatten its NHWC activation directly.
    w3t = jnp.transpose(
        params["lin1_w"].reshape(hidden, c2, Hc, Wc), (0, 2, 3, 1)
    ).reshape(hidden, feat).T.astype(jnp.bfloat16)             # [feat, hidden]
    b3 = params["lin1_b"].reshape(1, -1).astype(jnp.float32)
    w4t = params["lin2_w"].T.astype(jnp.bfloat16)              # [hidden, hidden]
    b4 = params["lin2_b"].reshape(1, -1).astype(jnp.float32)
    # lin3 zero-padded to a full 128-lane tile; the 2 real logits are the
    # first two columns, sliced off outside the kernel.
    w5p = jnp.zeros((hidden, LIN3_PAD), jnp.bfloat16).at[:, :2].set(
        params["lin3_w"].T.astype(jnp.bfloat16))
    b5p = jnp.zeros((1, LIN3_PAD), jnp.float32).at[:, :2].set(
        params["lin3_b"].reshape(1, -1).astype(jnp.float32))

    # Resident-weight VMEM budget (pipeline may double-buffer each operand).
    # Re-check against v7x's 64 MiB VMEM if `hidden` / input_shape grow.
    resident_bf16_bytes = 2 * (feat * hidden + hidden * hidden + hidden * LIN3_PAD)
    assert 2 * resident_bf16_bytes < (32 << 20), \
        "lin weights no longer fit resident in VMEM; tile lin2 over columns"

    probs = pl.pallas_call(
        _fused_kernel,
        out_shape=jax.ShapeDtypeStruct((G, gb, LIN3_PAD), jnp.float32),
        grid_spec=pltpu.PrefetchScalarGridSpec(
            num_scalar_prefetch=0,
            grid=(G,),
            in_specs=[
                pl.BlockSpec((gb, H, W, 1), lambda g: (g, 0, 0, 0)),    # x
                pl.BlockSpec((3, 3, 1, c1), lambda g: (0, 0, 0, 0)),    # w1
                pl.BlockSpec((1, c1), lambda g: (0, 0)),                # b1
                pl.BlockSpec((3, 3, c1, c2), lambda g: (0, 0, 0, 0)),   # w2
                pl.BlockSpec((1, c2), lambda g: (0, 0)),                # b2
                pl.BlockSpec((feat, hidden), lambda g: (0, 0)),         # w3t
                pl.BlockSpec((1, hidden), lambda g: (0, 0)),            # b3
                pl.BlockSpec((hidden, hidden), lambda g: (0, 0)),       # w4t
                pl.BlockSpec((1, hidden), lambda g: (0, 0)),            # b4
                pl.BlockSpec((hidden, LIN3_PAD), lambda g: (0, 0)),     # w5p
                pl.BlockSpec((1, LIN3_PAD), lambda g: (0, 0)),          # b5p
            ],
            out_specs=pl.BlockSpec((1, gb, LIN3_PAD), lambda g: (g, 0, 0)),
            scratch_shapes=[pltpu.VMEM((gb, feat), jnp.float32)],
        ),
        compiler_params=pltpu.CompilerParams(
            dimension_semantics=("parallel",),       # v7x: groups split over 2 TCs
            vmem_limit_bytes=32 << 20),
    )(x_nhwc, w1, b1, w2, b2, w3t, b3, w4t, b4, w5p, b5p)
    return probs[:, :, :2].reshape(B, 2)


if __name__ == "__main__":
    input_shape = (16, 16)   # H,W > 8; linear1 in-dim = 8 * 8 * 8 = 512
    n_filters = 16
    batch = 2

    key = jax.random.PRNGKey(0)
    k_params, k_x, k_xs = jax.random.split(key, 3)
    params = init_params(input_shape, n_filters, k_params)
    x = jax.random.normal(k_x, (batch, 1, *input_shape), jnp.float32)  # NCHW

    # Early-exit paths (conv-only kernels).
    p1 = jax.block_until_ready(pneumonia_forward(x, params, out=-2))
    assert p1.shape == (batch, n_filters, input_shape[0] - 4, input_shape[1] - 4)
    p2 = jax.block_until_ready(pneumonia_forward(x, params, out=-1))
    assert p2.shape == (batch, n_filters // 2, input_shape[0] - 8, input_shape[1] - 8)

    # Full fused forward (Softmax(dim=0) over the whole batch, like the module).
    y = jax.block_until_ready(pneumonia_forward(x, params, out=0))
    assert y.shape == (batch, 2)
    assert bool(jnp.allclose(jnp.sum(y, axis=0), jnp.ones((2,)), atol=1e-3))
    assert bool(jnp.all(jnp.isfinite(y)))

    # Grouped serving mode: 4 independent batches of 2 in one call; the MLP
    # weights are fetched to VMEM once and reused across groups.
    xs = jax.random.normal(k_xs, (4 * batch, 1, *input_shape), jnp.float32)
    ys = jax.block_until_ready(
        pneumonia_forward(xs, params, out=0, group_size=batch))
    assert ys.shape == (4 * batch, 2)
    col_sums = jnp.sum(ys.reshape(4, batch, 2), axis=1)
    assert bool(jnp.allclose(col_sums, jnp.ones((4, 2)), atol=1e-3))
    # Group 0 of the stacked call matches a standalone call on the same data.
    y0 = jax.block_until_ready(pneumonia_forward(xs[:batch], params, out=0))
    assert bool(jnp.allclose(ys[:batch], y0, atol=1e-5, rtol=1e-5))

    print("KERNEL_OK")
</pallas_src>

<mosaic_0001>
module attributes {stable_mosaic.version = 11 : i64} {
  func.func @_conv1_stage_kernel(%arg0: memref<2x16x16x1xf32, #tpu.memory_space<vmem>>, %arg1: memref<3x3x1x16xf32, #tpu.memory_space<vmem>>, %arg2: memref<1x16xf32, #tpu.memory_space<vmem>>, %arg3: memref<2x12x12x16xf32, #tpu.memory_space<vmem>>) attributes {dimension_semantics = [], scalar_prefetch = 0 : i64, scratch_operands = 0 : i64, tpu.core_type = #tpu.core_type<tc>} {
    %c0 = arith.constant 0 : index
    %c0_0 = arith.constant 0 : index
    %c0_1 = arith.constant 0 : index
    %c0_2 = arith.constant 0 : index
    %0 = vector.load %arg0[%c0, %c0_0, %c0_1, %c0_2] : memref<2x16x16x1xf32, #tpu.memory_space<vmem>>, vector<2x16x16x1xf32>
    %c0_3 = arith.constant 0 : index
    %c0_4 = arith.constant 0 : index
    %c0_5 = arith.constant 0 : index
    %c0_6 = arith.constant 0 : index
    %1 = vector.load %arg1[%c0_3, %c0_4, %c0_5, %c0_6] : memref<3x3x1x16xf32, #tpu.memory_space<vmem>>, vector<3x3x1x16xf32>
    %c0_7 = arith.constant 0 : index
    %c0_8 = arith.constant 0 : index
    %2 = vector.load %arg2[%c0_7, %c0_8] : memref<1x16xf32, #tpu.memory_space<vmem>>, vector<1x16xf32>
    %cst = arith.constant 0.000000e+00 : f32
    %3 = vector.broadcast %cst : f32 to vector<2x14x14x16xf32>
    %4 = vector.extract_strided_slice %0 {offsets = [0, 0, 0, 0], sizes = [2, 14, 14, 1], strides = [1, 1, 1, 1]} : vector<2x16x16x1xf32> to vector<2x14x14x1xf32>
    %5 = vector.extract_strided_slice %1 {offsets = [0, 0, 0, 0], sizes = [1, 1, 1, 16], strides = [1, 1, 1, 1]} : vector<3x3x1x16xf32> to vector<1x1x1x16xf32>
    %6 = vector.shape_cast %5 : vector<1x1x1x16xf32> to vector<16xf32>
    %7 = vector.shape_cast %6 : vector<16xf32> to vector<1x1x1x16xf32>
    %8 = vector.broadcast %4 : vector<2x14x14x1xf32> to vector<2x14x14x16xf32>
    %9 = vector.broadcast %7 : vector<1x1x1x16xf32> to vector<2x14x14x16xf32>
    %10 = arith.mulf %8, %9 : vector<2x14x14x16xf32>
    %11 = arith.addf %3, %10 : vector<2x14x14x16xf32>
    %12 = vector.extract_strided_slice %0 {offsets = [0, 0, 1, 0], sizes = [2, 14, 14, 1], strides = [1, 1, 1, 1]} : vector<2x16x16x1xf32> to vector<2x14x14x1xf32>
    %13 = vector.extract_strided_slice %1 {offsets = [0, 1, 0, 0], sizes = [1, 1, 1, 16], strides = [1, 1, 1, 1]} : vector<3x3x1x16xf32> to vector<1x1x1x16xf32>
    %14 = vector.shape_cast %13 : vector<1x1x1x16xf32> to vector<16xf32>
    %15 = vector.shape_cast %14 : vector<16xf32> to vector<1x1x1x16xf32>
    %16 = vector.broadcast %12 : vector<2x14x14x1xf32> to vector<2x14x14x16xf32>
    %17 = vector.broadcast %15 : vector<1x1x1x16xf32> to vector<2x14x14x16xf32>
    %18 = arith.mulf %16, %17 : vector<2x14x14x16xf32>
    %19 = arith.addf %11, %18 : vector<2x14x14x16xf32>
    %20 = vector.extract_strided_slice %0 {offsets = [0, 0, 2, 0], sizes = [2, 14, 14, 1], strides = [1, 1, 1, 1]} : vector<2x16x16x1xf32> to vector<2x14x14x1xf32>
    %21 = vector.extract_strided_slice %1 {offsets = [0, 2, 0, 0], sizes = [1, 1, 1, 16], strides = [1, 1, 1, 1]} : vector<3x3x1x16xf32> to vector<1x1x1x16xf32>
    %22 = vector.shape_cast %21 : vector<1x1x1x16xf32> to vector<16xf32>
    %23 = vector.shape_cast %22 : vector<16xf32> to vector<1x1x1x16xf32>
    %24 = vector.broadcast %20 : vector<2x14x14x1xf32> to vector<2x14x14x16xf32>
    %25 = vector.broadcast %23 : vector<1x1x1x16xf32> to vector<2x14x14x16xf32>
    %26 = arith.mulf %24, %25 : vector<2x14x14x16xf32>
    %27 = arith.addf %19, %26 : vector<2x14x14x16xf32>
    %28 = vector.extract_strided_slice %0 {offsets = [0, 1, 0, 0], sizes = [2, 14, 14, 1], strides = [1, 1, 1, 1]} : vector<2x16x16x1xf32> to vector<2x14x14x1xf32>
    %29 = vector.extract_strided_slice %1 {offsets = [1, 0, 0, 0], sizes = [1, 1, 1, 16], strides = [1, 1, 1, 1]} : vector<3x3x1x16xf32> to vector<1x1x1x16xf32>
    %30 = vector.shape_cast %29 : vector<1x1x1x16xf32> to vector<16xf32>
    %31 = vector.shape_cast %30 : vector<16xf32> to vector<1x1x1x16xf32>
    %32 = vector.broadcast %28 : vector<2x14x14x1xf32> to vector<2x14x14x16xf32>
    %33 = vector.broadcast %31 : vector<1x1x1x16xf32> to vector<2x14x14x16xf32>
    %34 = arith.mulf %32, %33 : vector<2x14x14x16xf32>
    %35 = arith.addf %27, %34 : vector<2x14x14x16xf32>
    %36 = vector.extract_strided_slice %0 {offsets = [0, 1, 1, 0], sizes = [2, 14, 14, 1], strides = [1, 1, 1, 1]} : vector<2x16x16x1xf32> to vector<2x14x14x1xf32>
    %37 = vector.extract_strided_slice %1 {offsets = [1, 1, 0, 0], sizes = [1, 1, 1, 16], strides = [1, 1, 1, 1]} : vector<3x3x1x16xf32> to vector<1x1x1x16xf32>
    %38 = vector.shape_cast %37 : vector<1x1x1x16xf32> to vector<16xf32>
    %39 = vector.shape_cast %38 : vector<16xf32> to vector<1x1x1x16xf32>
    %40 = vector.broadcast %36 : vector<2x14x14x1xf32> to vector<2x14x14x16xf32>
    %41 = vector.broadcast %39 : vector<1x1x1x16xf32> to vector<2x14x14x16xf32>
    %42 = arith.mulf %40, %41 : vector<2x14x14x16xf32>
    %43 = arith.addf %35, %42 : vector<2x14x14x16xf32>
    %44 = vector.extract_strided_slice %0 {offsets = [0, 1, 2, 0], sizes = [2, 14, 14, 1], strides = [1, 1, 1, 1]} : vector<2x16x16x1xf32> to vector<2x14x14x1xf32>
    %45 = vector.extract_strided_slice %1 {offsets = [1, 2, 0, 0], sizes = [1, 1, 1, 16], strides = [1, 1, 1, 1]} : vector<3x3x1x16xf32> to vector<1x1x1x16xf32>
    %46 = vector.shape_cast %45 : vector<1x1x1x16xf32> to vector<16xf32>
    %47 = vector.shape_cast %46 : vector<16xf32> to vector<1x1x1x16xf32>
    %48 = vector.broadcast %44 : vector<2x14x14x1xf32> to vector<2x14x14x16xf32>
    %49 = vector.broadcast %47 : vector<1x1x1x16xf32> to vector<2x14x14x16xf32>
    %50 = arith.mulf %48, %49 : vector<2x14x14x16xf32>
    %51 = arith.addf %43, %50 : vector<2x14x14x16xf32>
    %52 = vector.extract_strided_slice %0 {offsets = [0, 2, 0, 0], sizes = [2, 14, 14, 1], strides = [1, 1, 1, 1]} : vector<2x16x16x1xf32> to vector<2x14x14x1xf32>
    %53 = vector.extract_strided_slice %1 {offsets = [2, 0, 0, 0], sizes = [1, 1, 1, 16], strides = [1, 1, 1, 1]} : vector<3x3x1x16xf32> to vector<1x1x1x16xf32>
    %54 = vector.shape_cast %53 : vector<1x1x1x16xf32> to vector<16xf32>
    %55 = vector.shape_cast %54 : vector<16xf32> to vector<1x1x1x16xf32>
    %56 = vector.broadcast %52 : vector<2x14x14x1xf32> to vector<2x14x14x16xf32>
    %57 = vector.broadcast %55 : vector<1x1x1x16xf32> to vector<2x14x14x16xf32>
    %58 = arith.mulf %56, %57 : vector<2x14x14x16xf32>
    %59 = arith.addf %51, %58 : vector<2x14x14x16xf32>
    %60 = vector.extract_strided_slice %0 {offsets = [0, 2, 1, 0], sizes = [2, 14, 14, 1], strides = [1, 1, 1, 1]} : vector<2x16x16x1xf32> to vector<2x14x14x1xf32>
    %61 = vector.extract_strided_slice %1 {offsets = [2, 1, 0, 0], sizes = [1, 1, 1, 16], strides = [1, 1, 1, 1]} : vector<3x3x1x16xf32> to vector<1x1x1x16xf32>
    %62 = vector.shape_cast %61 : vector<1x1x1x16xf32> to vector<16xf32>
    %63 = vector.shape_cast %62 : vector<16xf32> to vector<1x1x1x16xf32>
    %64 = vector.broadcast %60 : vector<2x14x14x1xf32> to vector<2x14x14x16xf32>
    %65 = vector.broadcast %63 : vector<1x1x1x16xf32> to vector<2x14x14x16xf32>
    %66 = arith.mulf %64, %65 : vector<2x14x14x16xf32>
    %67 = arith.addf %59, %66 : vector<2x14x14x16xf32>
    %68 = vector.extract_strided_slice %0 {offsets = [0, 2, 2, 0], sizes = [2, 14, 14, 1], strides = [1, 1, 1, 1]} : vector<2x16x16x1xf32> to vector<2x14x14x1xf32>
    %69 = vector.extract_strided_slice %1 {offsets = [2, 2, 0, 0], sizes = [1, 1, 1, 16], strides = [1, 1, 1, 1]} : vector<3x3x1x16xf32> to vector<1x1x1x16xf32>
    %70 = vector.shape_cast %69 : vector<1x1x1x16xf32> to vector<16xf32>
    %71 = vector.shape_cast %70 : vector<16xf32> to vector<1x1x1x16xf32>
    %72 = vector.broadcast %68 : vector<2x14x14x1xf32> to vector<2x14x14x16xf32>
    %73 = vector.broadcast %71 : vector<1x1x1x16xf32> to vector<2x14x14x16xf32>
    %74 = arith.mulf %72, %73 : vector<2x14x14x16xf32>
    %75 = arith.addf %67, %74 : vector<2x14x14x16xf32>
    %76 = vector.shape_cast %2 : vector<1x16xf32> to vector<1x1x1x16xf32>
    %77 = vector.broadcast %76 : vector<1x1x1x16xf32> to vector<2x14x14x16xf32>
    %78 = arith.addf %75, %77 : vector<2x14x14x16xf32>
    %79 = vector.extract_strided_slice %78 {offsets = [0, 0, 0, 0], sizes = [2, 12, 12, 16], strides = [1, 1, 1, 1]} : vector<2x14x14x16xf32> to vector<2x12x12x16xf32>
    %80 = vector.extract_strided_slice %78 {offsets = [0, 0, 1, 0], sizes = [2, 12, 12, 16], strides = [1, 1, 1, 1]} : vector<2x14x14x16xf32> to vector<2x12x12x16xf32>
    %81 = arith.maximumf %79, %80 : vector<2x12x12x16xf32>
    %82 = vector.extract_strided_slice %78 {offsets = [0, 0, 2, 0], sizes = [2, 12, 12, 16], strides = [1, 1, 1, 1]} : vector<2x14x14x16xf32> to vector<2x12x12x16xf32>
    %83 = arith.maximumf %81, %82 : vector<2x12x12x16xf32>
    %84 = vector.extract_strided_slice %78 {offsets = [0, 1, 0, 0], sizes = [2, 12, 12, 16], strides = [1, 1, 1, 1]} : vector<2x14x14x16xf32> to vector<2x12x12x16xf32>
    %85 = arith.maximumf %83, %84 : vector<2x12x12x16xf32>
    %86 = vector.extract_strided_slice %78 {offsets = [0, 1, 1, 0], sizes = [2, 12, 12, 16], strides = [1, 1, 1, 1]} : vector<2x14x14x16xf32> to vector<2x12x12x16xf32>
    %87 = arith.maximumf %85, %86 : vector<2x12x12x16xf32>
    %88 = vector.extract_strided_slice %78 {offsets = [0, 1, 2, 0], sizes = [2, 12, 12, 16], strides = [1, 1, 1, 1]} : vector<2x14x14x16xf32> to vector<2x12x12x16xf32>
    %89 = arith.maximumf %87, %88 : vector<2x12x12x16xf32>
    %90 = vector.extract_strided_slice %78 {offsets = [0, 2, 0, 0], sizes = [2, 12, 12, 16], strides = [1, 1, 1, 1]} : vector<2x14x14x16xf32> to vector<2x12x12x16xf32>
    %91 = arith.maximumf %89, %90 : vector<2x12x12x16xf32>
    %92 = vector.extract_strided_slice %78 {offsets = [0, 2, 1, 0], sizes = [2, 12, 12, 16], strides = [1, 1, 1, 1]} : vector<2x14x14x16xf32> to vector<2x12x12x16xf32>
    %93 = arith.maximumf %91, %92 : vector<2x12x12x16xf32>
    %94 = vector.extract_strided_slice %78 {offsets = [0, 2, 2, 0], sizes = [2, 12, 12, 16], strides = [1, 1, 1, 1]} : vector<2x14x14x16xf32> to vector<2x12x12x16xf32>
    %95 = arith.maximumf %93, %94 : vector<2x12x12x16xf32>
    %c0_9 = arith.constant 0 : index
    %c0_10 = arith.constant 0 : index
    %c0_11 = arith.constant 0 : index
    %c0_12 = arith.constant 0 : index
    %96 = vector.load %arg3[%c0_9, %c0_10, %c0_11, %c0_12] : memref<2x12x12x16xf32, #tpu.memory_space<vmem>>, vector<2x12x12x16xf32>
    tpu.vector_store %arg3[%c0_9, %c0_10, %c0_11, %c0_12], %95 {strides = array<i32>} : memref<2x12x12x16xf32, #tpu.memory_space<vmem>>, vector<2x12x12x16xf32>,
    return
  }
}

</mosaic_0001>

<llo_original>
// kernel: pneumonia_forward.1
$region0: #{pneumonia_forward.1}
  #allocation0 [shape = 'u32[]', space=smem, size = 0x4, offset = 0x4, fixed_abs, tag = 'smem constant byte address 0x4 - core index']
  #allocation1 [shape = 'u32[144,128]{1,0:T(1,128)}', space=vmem, size = 0x12000, scoped, tag = 'internal scratch']
  %s0 = inlined_call_operand.vmem [shape: f32[2,16,16,1], index: 0, kind: input, shape index: {}]
  %s1 = inlined_call_operand.vmem [shape: f32[3,3,1,16], index: 1, kind: input, shape index: {}]
  %s2 = inlined_call_operand.vmem [shape: f32[1,16], index: 2, kind: input, shape index: {}]
  %s3 = inlined_call_operand.vmem [shape: f32[2,12,12,16], index: 3, kind: output, shape index: {}]
  %s4 = sld [smem:[#allocation0]]
  $region22: #{pneumonia_forward.1} parent=0
    _
  %s6 = ssub.s32 1, %s4
  %s7 = scalar_select 0, %s6, %s4
  // Predicated region
  $region2: #{pneumonia_forward.1} parent=0 // pred_check
    _
  $region3: #{pneumonia_forward.1} parent=0 // pred_check_branch
    %9 = sbr.rel (0) target = $region5
  $region4: #{pneumonia_forward.1} parent=0 // pred_region
    _
  $region5: #{pneumonia_forward.1} parent=0 // pred_fallthru
    _
  // Predicated region
  $region6: #{pneumonia_forward.1} parent=0 // pred_check
    _
  $region7: #{pneumonia_forward.1} parent=0 // pred_check_branch
    %11 = sbr.rel (0) target = $region9
  $region8: #{pneumonia_forward.1} parent=0 // pred_region
    _
  $region9: #{pneumonia_forward.1} parent=0 // pred_fallthru
    _
  // Predicated region
  $region10: #{pneumonia_forward.1} parent=0 // pred_check
    _
  $region11: #{pneumonia_forward.1} parent=0 // pred_check_branch
    %13 = sbr.rel (0) target = $region13
  $region12: #{pneumonia_forward.1} parent=0 // pred_region
    _
  $region13: #{pneumonia_forward.1} parent=0 // pred_fallthru
    _
  %v14 = vld [vmem:[%s0] sm:$0xff]
  %v15 = vld [vmem:[%s0 + $0x8] sm:$0xff]
  %v16 = vld [vmem:[%s0 + $0x10] sm:$0xff]
  %v17 = vld [vmem:[%s0 + $0x18] sm:$0xff]
  %v18 = vld [vmem:[%s0 + $0x20] sm:$0xff]
  %v19 = vld [vmem:[%s0 + $0x28] sm:$0xff]
  %v20 = vld [vmem:[%s0 + $0x30] sm:$0xff]
  %v21 = vld [vmem:[%s0 + $0x38] sm:$0xff]
  %v22 = vld [vmem:[%s0 + $0x40] sm:$0xff]
  %v23 = vld [vmem:[%s0 + $0x48] sm:$0xff]
  %v24 = vld [vmem:[%s0 + $0x50] sm:$0xff]
  %v25 = vld [vmem:[%s0 + $0x58] sm:$0xff]
  %v26 = vld [vmem:[%s0 + $0x60] sm:$0xff]
  %v27 = vld [vmem:[%s0 + $0x68] sm:$0xff]
  %v28 = vld [vmem:[%s0 + $0x70] sm:$0xff]
  %v29 = vld [vmem:[%s0 + $0x78] sm:$0xff]
  %v30 = vld [vmem:[%s0 + $0x80] sm:$0xff]
  %v31 = vld [vmem:[%s0 + $0x88] sm:$0xff]
  %v32 = vld [vmem:[%s0 + $0x90] sm:$0xff]
  %v33 = vld [vmem:[%s0 + $0x98] sm:$0xff]
  %v34 = vld [vmem:[%s0 + $0xa0] sm:$0xff]
  %v35 = vld [vmem:[%s0 + $0xa8] sm:$0xff]
  %v36 = vld [vmem:[%s0 + $0xb0] sm:$0xff]
  %v37 = vld [vmem:[%s0 + $0xb8] sm:$0xff]
  %v38 = vld [vmem:[%s0 + $0xc0] sm:$0xff]
  %v39 = vld [vmem:[%s0 + $0xc8] sm:$0xff]
  %v40 = vld [vmem:[%s0 + $0xd0] sm:$0xff]
  %v41 = vld [vmem:[%s0 + $0xd8] sm:$0xff]
  %v42 = vld [vmem:[%s0 + $0xe0] sm:$0xff]
  %v43 = vld [vmem:[%s0 + $0xe8] sm:$0xff]
  %v44 = vld [vmem:[%s0 + $0xf0] sm:$0xff]
  %v45 = vld [vmem:[%s0 + $0xf8] sm:$0xff]
  %v46 = vld [vmem:[%s0 + $0x100] sm:$0xff]
  %v47 = vld [vmem:[%s0 + $0x108] sm:$0xff]
  %v48 = vld [vmem:[%s0 + $0x110] sm:$0xff]
  %v49 = vld [vmem:[%s0 + $0x118] sm:$0xff]
  %v50 = vld [vmem:[%s0 + $0x120] sm:$0xff]
  %v51 = vld [vmem:[%s0 + $0x128] sm:$0xff]
  %v52 = vld [vmem:[%s0 + $0x130] sm:$0xff]
  %v53 = vld [vmem:[%s0 + $0x138] sm:$0xff]
  %v54 = vld [vmem:[%s0 + $0x140] sm:$0xff]
  %v55 = vld [vmem:[%s0 + $0x148] sm:$0xff]
  %v56 = vld [vmem:[%s0 + $0x150] sm:$0xff]
  %v57 = vld [vmem:[%s0 + $0x158] sm:$0xff]
  %v58 = vld [vmem:[%s0 + $0x160] sm:$0xff]
  %v59 = vld [vmem:[%s0 + $0x168] sm:$0xff]
  %v60 = vld [vmem:[%s0 + $0x170] sm:$0xff]
  %v61 = vld [vmem:[%s0 + $0x178] sm:$0xff]
  %v62 = vld [vmem:[%s0 + $0x180] sm:$0xff]
  %v63 = vld [vmem:[%s0 + $0x188] sm:$0xff]
  %v64 = vld [vmem:[%s0 + $0x190] sm:$0xff]
  %v65 = vld [vmem:[%s0 + $0x198] sm:$0xff]
  %v66 = vld [vmem:[%s0 + $0x1a0] sm:$0xff]
  %v67 = vld [vmem:[%s0 + $0x1a8] sm:$0xff]
  %v68 = vld [vmem:[%s0 + $0x1b0] sm:$0xff]
  %v69 = vld [vmem:[%s0 + $0x1b8] sm:$0xff]
  %v70 = vld [vmem:[%s0 + $0x1c0] sm:$0xff]
  %v71 = vld [vmem:[%s0 + $0x1c8] sm:$0xff]
  %v72 = vld [vmem:[%s0 + $0x1d0] sm:$0xff]
  %v73 = vld [vmem:[%s0 + $0x1d8] sm:$0xff]
  %v74 = vld [vmem:[%s0 + $0x1e0] sm:$0xff]
  %v75 = vld [vmem:[%s0 + $0x1e8] sm:$0xff]
  %v76 = vld [vmem:[%s0 + $0x1f0] sm:$0xff]
  %v77 = vld [vmem:[%s0 + $0x1f8] sm:$0xff]
  %v78 = vld [vmem:[%s1] sm:$0x1]
  %v79 = vld [vmem:[%s1 + $0x1] sm:$0x1]
  %v80 = vld [vmem:[%s1 + $0x2] sm:$0x1]
  %v81 = vld [vmem:[%s1 + $0x3] sm:$0x1]
  %v82 = vld [vmem:[%s1 + $0x4] sm:$0x1]
  %v83 = vld [vmem:[%s1 + $0x5] sm:$0x1]
  %v84 = vld [vmem:[%s1 + $0x6] sm:$0x1]
  %v85 = vld [vmem:[%s1 + $0x7] sm:$0x1]
  %v86 = vld [vmem:[%s1 + $0x8] sm:$0x1]
  %v87 = vld [vmem:[%s2] sm:$0x1]
  %89 = vset.pattern.permute.xlu0 0
  %90 = vperm.xlu0 %89, %v14
  %v91 = vpop.permute.xlu0 %90
  %94 = vset.pattern.permute.xlu0 0
  %95 = vperm.xlu0 %94, %v15
  %v96 = vpop.permute.xlu0 %95
  %99 = vset.pattern.permute.xlu0 0
  %100 = vperm.xlu0 %99, %v16
  %v101 = vpop.permute.xlu0 %100
  %104 = vset.pattern.permute.xlu0 0
  %105 = vperm.xlu0 %104, %v17
  %v106 = vpop.permute.xlu0 %105
  %109 = vset.pattern.permute.xlu0 0
  %110 = vperm.xlu0 %109, %v18
  %v111 = vpop.permute.xlu0 %110
  %114 = vset.pattern.permute.xlu0 0
  %115 = vperm.xlu0 %114, %v19
  %v116 = vpop.permute.xlu0 %115
  %119 = vset.pattern.permute.xlu0 0
  %120 = vperm.xlu0 %119, %v20
  %v121 = vpop.permute.xlu0 %120
  %124 = vset.pattern.permute.xlu0 0
  %125 = vperm.xlu0 %124, %v21
  %v126 = vpop.permute.xlu0 %125
  %129 = vset.pattern.permute.xlu0 0
  %130 = vperm.xlu0 %129, %v22
  %v131 = vpop.permute.xlu0 %130
  %134 = vset.pattern.permute.xlu0 0
  %135 = vperm.xlu0 %134, %v23
  %v136 = vpop.permute.xlu0 %135
  %139 = vset.pattern.permute.xlu0 0
  %140 = vperm.xlu0 %139, %v24
  %v141 = vpop.permute.xlu0 %140
  %144 = vset.pattern.permute.xlu0 0
  %145 = vperm.xlu0 %144, %v25
  %v146 = vpop.permute.xlu0 %145
  %149 = vset.pattern.permute.xlu0 0
  %150 = vperm.xlu0 %149, %v26
  %v151 = vpop.permute.xlu0 %150
  %154 = vset.pattern.permute.xlu0 0
  %155 = vperm.xlu0 %154, %v27
  %v156 = vpop.permute.xlu0 %155
  %159 = vset.pattern.permute.xlu0 0
  %160 = vperm.xlu0 %159, %v28
  %v161 = vpop.permute.xlu0 %160
  %164 = vset.pattern.permute.xlu0 0
  %165 = vperm.xlu0 %164, %v29
  %v166 = vpop.permute.xlu0 %165
  %169 = vset.pattern.permute.xlu0 0
  %170 = vperm.xlu0 %169, %v30
  %v171 = vpop.permute.xlu0 %170
  %174 = vset.pattern.permute.xlu0 0
  %175 = vperm.xlu0 %174, %v31
  %v176 = vpop.permute.xlu0 %175
  %179 = vset.pattern.permute.xlu0 0
  %180 = vperm.xlu0 %179, %v32
  %v181 = vpop.permute.xlu0 %180
  %184 = vset.pattern.permute.xlu0 0
  %185 = vperm.xlu0 %184, %v33
  %v186 = vpop.permute.xlu0 %185
  %189 = vset.pattern.permute.xlu0 0
  %190 = vperm.xlu0 %189, %v34
  %v191 = vpop.permute.xlu0 %190
  %194 = vset.pattern.permute.xlu0 0
  %195 = vperm.xlu0 %194, %v35
  %v196 = vpop.permute.xlu0 %195
  %199 = vset.pattern.permute.xlu0 0
  %200 = vperm.xlu0 %199, %v36
  %v201 = vpop.permute.xlu0 %200
  %204 = vset.pattern.permute.xlu0 0
  %205 = vperm.xlu0 %204, %v37
  %v206 = vpop.permute.xlu0 %205
  %209 = vset.pattern.permute.xlu0 0
  %210 = vperm.xlu0 %209, %v38
  %v211 = vpop.permute.xlu0 %210
  %214 = vset.pattern.permute.xlu0 0
  %215 = vperm.xlu0 %214, %v39
  %v216 = vpop.permute.xlu0 %215
  %219 = vset.pattern.permute.xlu0 0
  %220 = vperm.xlu0 %219, %v40
  %v221 = vpop.permute.xlu0 %220
  %224 = vset.pattern.permute.xlu0 0
  %225 = vperm.xlu0 %224, %v41
  %v226 = vpop.permute.xlu0 %225
  %229 = vset.pattern.permute.xlu0 0
  %230 = vperm.xlu0 %229, %v46
  %v231 = vpop.permute.xlu0 %230
  %234 = vset.pattern.permute.xlu0 0
  %235 = vperm.xlu0 %234, %v47
  %v236 = vpop.permute.xlu0 %235
  %239 = vset.pattern.permute.xlu0 0
  %240 = vperm.xlu0 %239, %v48
  %v241 = vpop.permute.xlu0 %240
  %244 = vset.pattern.permute.xlu0 0
  %245 = vperm.xlu0 %244, %v49
  %v246 = vpop.permute.xlu0 %245
  %249 = vset.pattern.permute.xlu0 0
  %250 = vperm.xlu0 %249, %v50
  %v251 = vpop.permute.xlu0 %250
  %254 = vset.pattern.permute.xlu0 0
  %255 = vperm.xlu0 %254, %v51
  %v256 = vpop.permute.xlu0 %255
  %259 = vset.pattern.permute.xlu0 0
  %260 = vperm.xlu0 %259, %v52
  %v261 = vpop.permute.xlu0 %260
  %264 = vset.pattern.permute.xlu0 0
  %265 = vperm.xlu0 %264, %v53
  %v266 = vpop.permute.xlu0 %265
  %269 = vset.pattern.permute.xlu0 0
  %270 = vperm.xlu0 %269, %v54
  %v271 = vpop.permute.xlu0 %270
  %274 = vset.pattern.permute.xlu0 0
  %275 = vperm.xlu0 %274, %v55
  %v276 = vpop.permute.xlu0 %275
  %279 = vset.pattern.permute.xlu0 0
  %280 = vperm.xlu0 %279, %v56
  %v281 = vpop.permute.xlu0 %280
  %284 = vset.pattern.permute.xlu0 0
  %285 = vperm.xlu0 %284, %v57
  %v286 = vpop.permute.xlu0 %285
  %289 = vset.pattern.permute.xlu0 0
  %290 = vperm.xlu0 %289, %v58
  %v291 = vpop.permute.xlu0 %290
  %294 = vset.pattern.permute.xlu0 0
  %295 = vperm.xlu0 %294, %v59
  %v296 = vpop.permute.xlu0 %295
  %299 = vset.pattern.permute.xlu0 0
  %300 = vperm.xlu0 %299, %v60
  %v301 = vpop.permute.xlu0 %300
  %304 = vset.pattern.permute.xlu0 0
  %305 = vperm.xlu0 %304, %v61
  %v306 = vpop.permute.xlu0 %305
  %309 = vset.pattern.permute.xlu0 0
  %310 = vperm.xlu0 %309, %v62
  %v311 = vpop.permute.xlu0 %310
  %314 = vset.pattern.permute.xlu0 0
  %315 = vperm.xlu0 %314, %v63
  %v316 = vpop.permute.xlu0 %315
  %319 = vset.pattern.permute.xlu0 0
  %320 = vperm.xlu0 %319, %v64
  %v321 = vpop.permute.xlu0 %320
  %324 = vset.pattern.permute.xlu0 0
  %325 = vperm.xlu0 %324, %v65
  %v326 = vpop.permute.xlu0 %325
  %329 = vset.pattern.permute.xlu0 0
  %330 = vperm.xlu0 %329, %v66
  %v331 = vpop.permute.xlu0 %330
  %334 = vset.pattern.permute.xlu0 0
  %335 = vperm.xlu0 %334, %v67
  %v336 = vpop.permute.xlu0 %335
  %339 = vset.pattern.permute.xlu0 0
  %340 = vperm.xlu0 %339, %v68
  %v341 = vpop.permute.xlu0 %340
  %344 = vset.pattern.permute.xlu0 0
  %345 = vperm.xlu0 %344, %v69
  %v346 = vpop.permute.xlu0 %345
  %349 = vset.pattern.permute.xlu0 0
  %350 = vperm.xlu0 %349, %v70
  %v351 = vpop.permute.xlu0 %350
  %354 = vset.pattern.permute.xlu0 0
  %355 = vperm.xlu0 %354, %v71
  %v356 = vpop.permute.xlu0 %355
  %359 = vset.pattern.permute.xlu0 0
  %360 = vperm.xlu0 %359, %v72
  %v361 = vpop.permute.xlu0 %360
  %364 = vset.pattern.permute.xlu0 0
  %365 = vperm.xlu0 %364, %v73
  %v366 = vpop.permute.xlu0 %365
  %v369 = vlaneseq
  %v370 = vshrl.u32 %v369, 7
  %v371 = vsub.s32 0, %v370
  %v372 = vrot.slane %v78, %v371
  %v374 = vmul.f32 %v91, %v372
  %v375 = vmul.f32 %v96, %v372
  %v376 = vmul.f32 %v101, %v372
  %v377 = vmul.f32 %v106, %v372
  %v378 = vmul.f32 %v111, %v372
  %v379 = vmul.f32 %v116, %v372
  %v380 = vmul.f32 %v121, %v372
  %v381 = vmul.f32 %v126, %v372
  %v382 = vmul.f32 %v131, %v372
  %v383 = vmul.f32 %v136, %v372
  %v384 = vmul.f32 %v141, %v372
  %v385 = vmul.f32 %v146, %v372
  %v386 = vmul.f32 %v151, %v372
  %v387 = vmul.f32 %v156, %v372
  %v388 = vmul.f32 %v161, %v372
  %v389 = vmul.f32 %v166, %v372
  %v390 = vmul.f32 %v171, %v372
  %v391 = vmul.f32 %v176, %v372
  %v392 = vmul.f32 %v181, %v372
  %v393 = vmul.f32 %v186, %v372
  %v394 = vmul.f32 %v191, %v372
  %v395 = vmul.f32 %v196, %v372
  %v396 = vmul.f32 %v201, %v372
  %v397 = vmul.f32 %v206, %v372
  %v398 = vmul.f32 %v211, %v372
  %v399 = vmul.f32 %v216, %v372
  %v400 = vmul.f32 %v221, %v372
  %v401 = vmul.f32 %v226, %v372
  %v402 = vmul.f32 %v231, %v372
  %v403 = vmul.f32 %v236, %v372
  %v404 = vmul.f32 %v241, %v372
  %v405 = vmul.f32 %v246, %v372
  %v406 = vmul.f32 %v251, %v372
  %v407 = vmul.f32 %v256, %v372
  %v408 = vmul.f32 %v261, %v372
  %v409 = vmul.f32 %v266, %v372
  %v410 = vmul.f32 %v271, %v372
  %v411 = vmul.f32 %v276, %v372
  %v412 = vmul.f32 %v281, %v372
  %v413 = vmul.f32 %v286, %v372
  %v414 = vmul.f32 %v291, %v372
  %v415 = vmul.f32 %v296, %v372
  %v416 = vmul.f32 %v301, %v372
  %v417 = vmul.f32 %v306, %v372
  %v418 = vmul.f32 %v311, %v372
  %v419 = vmul.f32 %v316, %v372
  %v420 = vmul.f32 %v321, %v372
  %v421 = vmul.f32 %v326, %v372
  %v422 = vmul.f32 %v331, %v372
  %v423 = vmul.f32 %v336, %v372
  %v424 = vmul.f32 %v341, %v372
  %v425 = vmul.f32 %v346, %v372
  %v426 = vmul.f32 %v351, %v372
  %v427 = vmul.f32 %v356, %v372
  %v428 = vmul.f32 %v361, %v372
  %v429 = vmul.f32 %v366, %v372
  %v430 = vadd.f32 %v374, 0.0
  %v431 = vadd.f32 %v375, 0.0
  %v432 = vadd.f32 %v376, 0.0
  %v433 = vadd.f32 %v377, 0.0
  %v434 = vadd.f32 %v378, 0.0
  %v435 = vadd.f32 %v379, 0.0
  %v436 = vadd.f32 %v380, 0.0
  %v437 = vadd.f32 %v381, 0.0
  %v438 = vadd.f32 %v382, 0.0
  %v439 = vadd.f32 %v383, 0.0
  %v440 = vadd.f32 %v384, 0.0
  %v441 = vadd.f32 %v385, 0.0
  %v442 = vadd.f32 %v386, 0.0
  %v443 = vadd.f32 %v387, 0.0
  %v444 = vadd.f32 %v388, 0.0
  %v445 = vadd.f32 %v389, 0.0
  %v446 = vadd.f32 %v390, 0.0
  %v447 = vadd.f32 %v391, 0.0
  %v448 = vadd.f32 %v392, 0.0
  %v449 = vadd.f32 %v393, 0.0
  %v450 = vadd.f32 %v394, 0.0
  %v451 = vadd.f32 %v395, 0.0
  %v452 = vadd.f32 %v396, 0.0
  %v453 = vadd.f32 %v397, 0.0
  %v454 = vadd.f32 %v398, 0.0
  %v455 = vadd.f32 %v399, 0.0
  %v456 = vadd.f32 %v400, 0.0
  %v457 = vadd.f32 %v401, 0.0
  %v458 = vadd.f32 %v402, 0.0
  %v459 = vadd.f32 %v403, 0.0
  %v460 = vadd.f32 %v404, 0.0
  %v461 = vadd.f32 %v405, 0.0
  %v462 = vadd.f32 %v406, 0.0
  %v463 = vadd.f32 %v407, 0.0
  %v464 = vadd.f32 %v408, 0.0
  %v465 = vadd.f32 %v409, 0.0
  %v466 = vadd.f32 %v410, 0.0
  %v467 = vadd.f32 %v411, 0.0
  %v468 = vadd.f32 %v412, 0.0
  %v469 = vadd.f32 %v413, 0.0
  %v470 = vadd.f32 %v414, 0.0
  %v471 = vadd.f32 %v415, 0.0
  %v472 = vadd.f32 %v416, 0.0
  %v473 = vadd.f32 %v417, 0.0
  %v474 = vadd.f32 %v418, 0.0
  %v475 = vadd.f32 %v419, 0.0
  %v476 = vadd.f32 %v420, 0.0
  %v477 = vadd.f32 %v421, 0.0
  %v478 = vadd.f32 %v422, 0.0
  %v479 = vadd.f32 %v423, 0.0
  %v480 = vadd.f32 %v424, 0.0
  %v481 = vadd.f32 %v425, 0.0
  %v482 = vadd.f32 %v426, 0.0
  %v483 = vadd.f32 %v427, 0.0
  %v484 = vadd.f32 %v428, 0.0
  %v485 = vadd.f32 %v429, 0.0
  %v487 = vlaneseq
  %v488 = vshrl.u32 %v487, 7
  %v489 = vsub.s32 0, %v488
  %v490 = vrot.slane %v79, %v489
  %v492 = vmul.f32 %v91, %v490
  %v493 = vmul.f32 %v96, %v490
  %v494 = vmul.f32 %v101, %v490
  %v495 = vmul.f32 %v106, %v490
  %v496 = vmul.f32 %v111, %v490
  %v497 = vmul.f32 %v116, %v490
  %v498 = vmul.f32 %v121, %v490
  %v499 = vmul.f32 %v126, %v490
  %v500 = vmul.f32 %v131, %v490
  %v501 = vmul.f32 %v136, %v490
  %v502 = vmul.f32 %v141, %v490
  %v503 = vmul.f32 %v146, %v490
  %v504 = vmul.f32 %v151, %v490
  %v505 = vmul.f32 %v156, %v490
  %v506 = vmul.f32 %v161, %v490
  %v507 = vmul.f32 %v166, %v490
  %v508 = vmul.f32 %v171, %v490
  %v509 = vmul.f32 %v176, %v490
  %v510 = vmul.f32 %v181, %v490
  %v511 = vmul.f32 %v186, %v490
  %v512 = vmul.f32 %v191, %v490
  %v513 = vmul.f32 %v196, %v490
  %v514 = vmul.f32 %v201, %v490
  %v515 = vmul.f32 %v206, %v490
  %v516 = vmul.f32 %v211, %v490
  %v517 = vmul.f32 %v216, %v490
  %v518 = vmul.f32 %v221, %v490
  %v519 = vmul.f32 %v226, %v490
  %v520 = vmul.f32 %v231, %v490
  %v521 = vmul.f32 %v236, %v490
  %v522 = vmul.f32 %v241, %v490
  %v523 = vmul.f32 %v246, %v490
  %v524 = vmul.f32 %v251, %v490
  %v525 = vmul.f32 %v256, %v490
  %v526 = vmul.f32 %v261, %v490
  %v527 = vmul.f32 %v266, %v490
  %v528 = vmul.f32 %v271, %v490
  %v529 = vmul.f32 %v276, %v490
  %v530 = vmul.f32 %v281, %v490
  %v531 = vmul.f32 %v286, %v490
  %v532 = vmul.f32 %v291, %v490
  %v533 = vmul.f32 %v296, %v490
  %v534 = vmul.f32 %v301, %v490
  %v535 = vmul.f32 %v306, %v490
  %v536 = vmul.f32 %v311, %v490
  %v537 = vmul.f32 %v316, %v490
  %v538 = vmul.f32 %v321, %v490
  %v539 = vmul.f32 %v326, %v490
  %v540 = vmul.f32 %v331, %v490
  %v541 = vmul.f32 %v336, %v490
  %v542 = vmul.f32 %v341, %v490
  %v543 = vmul.f32 %v346, %v490
  %v544 = vmul.f32 %v351, %v490
  %v545 = vmul.f32 %v356, %v490
  %v546 = vmul.f32 %v361, %v490
  %v547 = vmul.f32 %v366, %v490
  %vm604 = vcmask 1046528
  %v605 = vrot.slane %v492, 1
  %v606 = vrot.slane %v493, 1
  %v607 = vsel %vm604, %v605, %v606
  %v608 = vrot.slane %v494, 1
  %v609 = vrot.slane %v495, 1
  %v610 = vsel %vm604, %v608, %v609
  %v611 = vrot.slane %v496, 1
  %v612 = vrot.slane %v497, 1
  %v613 = vsel %vm604, %v611, %v612
  %v614 = vrot.slane %v498, 1
  %v615 = vrot.slane %v499, 1
  %v616 = vsel %vm604, %v614, %v615
  %v617 = vrot.slane %v500, 1
  %v618 = vrot.slane %v501, 1
  %v619 = vsel %vm604, %v617, %v618
  %v620 = vrot.slane %v502, 1
  %v621 = vrot.slane %v503, 1
  %v622 = vsel %vm604, %v620, %v621
  %v623 = vrot.slane %v504, 1
  %v624 = vrot.slane %v505, 1
  %v625 = vsel %vm604, %v623, %v624
  %v626 = vrot.slane %v506, 1
  %v627 = vrot.slane %v507, 1
  %v628 = vsel %vm604, %v626, %v627
  %v629 = vrot.slane %v508, 1
  %v630 = vrot.slane %v509, 1
  %v631 = vsel %vm604, %v629, %v630
  %v632 = vrot.slane %v510, 1
  %v633 = vrot.slane %v511, 1
  %v634 = vsel %vm604, %v632, %v633
  %v635 = vrot.slane %v512, 1
  %v636 = vrot.slane %v513, 1
  %v637 = vsel %vm604, %v635, %v636
  %v638 = vrot.slane %v514, 1
  %v639 = vrot.slane %v515, 1
  %v640 = vsel %vm604, %v638, %v639
  %v641 = vrot.slane %v516, 1
  %v642 = vrot.slane %v517, 1
  %v643 = vsel %vm604, %v641, %v642
  %v644 = vrot.slane %v518, 1
  %v645 = vrot.slane %v519, 1
  %v646 = vsel %vm604, %v644, %v645
  %v647 = vrot.slane %v520, 1
  %v648 = vrot.slane %v521, 1
  %v649 = vsel %vm604, %v647, %v648
  %v650 = vrot.slane %v522, 1
  %v651 = vrot.slane %v523, 1
  %v652 = vsel %vm604, %v650, %v651
  %v653 = vrot.slane %v524, 1
  %v654 = vrot.slane %v525, 1
  %v655 = vsel %vm604, %v653, %v654
  %v656 = vrot.slane %v526, 1
  %v657 = vrot.slane %v527, 1
  %v658 = vsel %vm604, %v656, %v657
  %v659 = vrot.slane %v528, 1
  %v660 = vrot.slane %v529, 1
  %v661 = vsel %vm604, %v659, %v660
  %v662 = vrot.slane %v530, 1
  %v663 = vrot.slane %v531, 1
  %v664 = vsel %vm604, %v662, %v663
  %v665 = vrot.slane %v532, 1
  %v666 = vrot.slane %v533, 1
  %v667 = vsel %vm604, %v665, %v666
  %v668 = vrot.slane %v534, 1
  %v669 = vrot.slane %v535, 1
  %v670 = vsel %vm604, %v668, %v669
  %v671 = vrot.slane %v536, 1
  %v672 = vrot.slane %v537, 1
  %v673 = vsel %vm604, %v671, %v672
  %v674 = vrot.slane %v538, 1
  %v675 = vrot.slane %v539, 1
  %v676 = vsel %vm604, %v674, %v675
  %v677 = vrot.slane %v540, 1
  %v678 = vrot.slane %v541, 1
  %v679 = vsel %vm604, %v677, %v678
  %v680 = vrot.slane %v542, 1
  %v681 = vrot.slane %v543, 1
  %v682 = vsel %vm604, %v680, %v681
  %v683 = vrot.slane %v544, 1
  %v684 = vrot.slane %v545, 1
  %v685 = vsel %vm604, %v683, %v684
  %v686 = vrot.slane %v546, 1
  %v687 = vrot.slane %v547, 1
  %v688 = vsel %vm604, %v686, %v687
  %v745 = vadd.f32 %v430, %v607
  %v746 = vadd.f32 %v431, %v606
  %v747 = vadd.f32 %v432, %v610
  %v748 = vadd.f32 %v433, %v609
  %v749 = vadd.f32 %v434, %v613
  %v750 = vadd.f32 %v435, %v612
  %v751 = vadd.f32 %v436, %v616
  %v752 = vadd.f32 %v437, %v615
  %v753 = vadd.f32 %v438, %v619
  %v754 = vadd.f32 %v439, %v618
  %v755 = vadd.f32 %v440, %v622
  %v756 = vadd.f32 %v441, %v621
  %v757 = vadd.f32 %v442, %v625
  %v758 = vadd.f32 %v443, %v624
  %v759 = vadd.f32 %v444, %v628
  %v760 = vadd.f32 %v445, %v627
  %v761 = vadd.f32 %v446, %v631
  %v762 = vadd.f32 %v447, %v630
  %v763 = vadd.f32 %v448, %v634
  %v764 = vadd.f32 %v449, %v633
  %v765 = vadd.f32 %v450, %v637
  %v766 = vadd.f32 %v451, %v636
  %v767 = vadd.f32 %v452, %v640
  %v768 = vadd.f32 %v453, %v639
  %v769 = vadd.f32 %v454, %v643
  %v770 = vadd.f32 %v455, %v642
  %v771 = vadd.f32 %v456, %v646
  %v772 = vadd.f32 %v457, %v645
  %v773 = vadd.f32 %v458, %v649
  %v774 = vadd.f32 %v459, %v648
  %v775 = vadd.f32 %v460, %v652
  %v776 = vadd.f32 %v461, %v651
  %v777 = vadd.f32 %v462, %v655
  %v778 = vadd.f32 %v463, %v654
  %v779 = vadd.f32 %v464, %v658
  %v780 = vadd.f32 %v465, %v657
  %v781 = vadd.f32 %v466, %v661
  %v782 = vadd.f32 %v467, %v660
  %v783 = vadd.f32 %v468, %v664
  %v784 = vadd.f32 %v469, %v663
  %v785 = vadd.f32 %v470, %v667
  %v786 = vadd.f32 %v471, %v666
  %v787 = vadd.f32 %v472, %v670
  %v788 = vadd.f32 %v473, %v669
  %v789 = vadd.f32 %v474, %v673
  %v790 = vadd.f32 %v475, %v672
  %v791 = vadd.f32 %v476, %v676
  %v792 = vadd.f32 %v477, %v675
  %v793 = vadd.f32 %v478, %v679
  %v794 = vadd.f32 %v479, %v678
  %v795 = vadd.f32 %v480, %v682
  %v796 = vadd.f32 %v481, %v681
  %v797 = vadd.f32 %v482, %v685
  %v798 = vadd.f32 %v483, %v684
  %v799 = vadd.f32 %v484, %v688
  %v800 = vadd.f32 %v485, %v687
  %v802 = vlaneseq
  %v803 = vshrl.u32 %v802, 7
  %v804 = vsub.s32 0, %v803
  %v805 = vrot.slane %v80, %v804
  %v807 = vmul.f32 %v91, %v805
  %v808 = vmul.f32 %v96, %v805
  %v809 = vmul.f32 %v101, %v805
  %v810 = vmul.f32 %v106, %v805
  %v811 = vmul.f32 %v111, %v805
  %v812 = vmul.f32 %v116, %v805
  %v813 = vmul.f32 %v121, %v805
  %v814 = vmul.f32 %v126, %v805
  %v815 = vmul.f32 %v131, %v805
  %v816 = vmul.f32 %v136, %v805
  %v817 = vmul.f32 %v141, %v805
  %v818 = vmul.f32 %v146, %v805
  %v819 = vmul.f32 %v151, %v805
  %v820 = vmul.f32 %v156, %v805
  %v821 = vmul.f32 %v161, %v805
  %v822 = vmul.f32 %v166, %v805
  %v823 = vmul.f32 %v171, %v805
  %v824 = vmul.f32 %v176, %v805
  %v825 = vmul.f32 %v181, %v805
  %v826 = vmul.f32 %v186, %v805
  %v827 = vmul.f32 %v191, %v805
  %v828 = vmul.f32 %v196, %v805
  %v829 = vmul.f32 %v201, %v805
  %v830 = vmul.f32 %v206, %v805
  %v831 = vmul.f32 %v211, %v805
  %v832 = vmul.f32 %v216, %v805
  %v833 = vmul.f32 %v221, %v805
  %v834 = vmul.f32 %v226, %v805
  %v835 = vmul.f32 %v231, %v805
  %v836 = vmul.f32 %v236, %v805
  %v837 = vmul.f32 %v241, %v805
  %v838 = vmul.f32 %v246, %v805
  %v839 = vmul.f32 %v251, %v805
  %v840 = vmul.f32 %v256, %v805
  %v841 = vmul.f32 %v261, %v805
  %v842 = vmul.f32 %v266, %v805
  %v843 = vmul.f32 %v271, %v805
  %v844 = vmul.f32 %v276, %v805
  %v845 = vmul.f32 %v281, %v805
  %v846 = vmul.f32 %v286, %v805
  %v847 = vmul.f32 %v291, %v805
  %v848 = vmul.f32 %v296, %v805
  %v849 = vmul.f32 %v301, %v805
  %v850 = vmul.f32 %v306, %v805
  %v851 = vmul.f32 %v311, %v805
  %v852 = vmul.f32 %v316, %v805
  %v853 = vmul.f32 %v321, %v805
  %v854 = vmul.f32 %v326, %v805
  %v855 = vmul.f32 %v331, %v805
  %v856 = vmul.f32 %v336, %v805
  %v857 = vmul.f32 %v341, %v805
  %v858 = vmul.f32 %v346, %v805
  %v859 = vmul.f32 %v351, %v805
  %v860 = vmul.f32 %v356, %v805
  %v861 = vmul.f32 %v361, %v805
  %v862 = vmul.f32 %v366, %v805
  %vm919 = vcmask 1045504
  %v920 = vrot.slane %v807, 2
  %v921 = vrot.slane %v808, 2
  %v922 = vsel %vm919, %v920, %v921
  %v923 = vrot.slane %v809, 2
  %v924 = vrot.slane %v810, 2
  %v925 = vsel %vm919, %v923, %v924
  %v926 = vrot.slane %v811, 2
  %v927 = vrot.slane %v812, 2
  %v928 = vsel %vm919, %v926, %v927
  %v929 = vrot.slane %v813, 2
  %v930 = vrot.slane %v814, 2
  %v931 = vsel %vm919, %v929, %v930
  %v932 = vrot.slane %v815, 2
  %v933 = vrot.slane %v816, 2
  %v934 = vsel %vm919, %v932, %v933
  %v935 = vrot.slane %v817, 2
  %v936 = vrot.slane %v818, 2
  %v937 = vsel %vm919, %v935, %v936
  %v938 = vrot.slane %v819, 2
  %v939 = vrot.slane %v820, 2
  %v940 = vsel %vm919, %v938, %v939
  %v941 = vrot.slane %v821, 2
  %v942 = vrot.slane %v822, 2
  %v943 = vsel %vm919, %v941, %v942
  %v944 = vrot.slane %v823, 2
  %v945 = vrot.slane %v824, 2
  %v946 = vsel %vm919, %v944, %v945
  %v947 = vrot.slane %v825, 2
  %v948 = vrot.slane %v826, 2
  %v949 = vsel %vm919, %v947, %v948
  %v950 = vrot.slane %v827, 2
  %v951 = vrot.slane %v828, 2
  %v952 = vsel %vm919, %v950, %v951
  %v953 = vrot.slane %v829, 2
  %v954 = vrot.slane %v830, 2
  %v955 = vsel %vm919, %v953, %v954
  %v956 = vrot.slane %v831, 2
  %v957 = vrot.slane %v832, 2
  %v958 = vsel %vm919, %v956, %v957
  %v959 = vrot.slane %v833, 2
  %v960 = vrot.slane %v834, 2
  %v961 = vsel %vm919, %v959, %v960
  %v962 = vrot.slane %v835, 2
  %v963 = vrot.slane %v836, 2
  %v964 = vsel %vm919, %v962, %v963
  %v965 = vrot.slane %v837, 2
  %v966 = vrot.slane %v838, 2
  %v967 = vsel %vm919, %v965, %v966
  %v968 = vrot.slane %v839, 2
  %v969 = vrot.slane %v840, 2
  %v970 = vsel %vm919, %v968, %v969
  %v971 = vrot.slane %v841, 2
  %v972 = vrot.slane %v842, 2
  %v973 = vsel %vm919, %v971, %v972
  %v974 = vrot.slane %v843, 2
  %v975 = vrot.slane %v844, 2
  %v976 = vsel %vm919, %v974, %v975
  %v977 = vrot.slane %v845, 2
  %v978 = vrot.slane %v846, 2
  %v979 = vsel %vm919, %v977, %v978
  %v980 = vrot.slane %v847, 2
  %v981 = vrot.slane %v848, 2
  %v982 = vsel %vm919, %v980, %v981
  %v983 = vrot.slane %v849, 2
  %v984 = vrot.slane %v850, 2
  %v985 = vsel %vm919, %v983, %v984
  %v986 = vrot.slane %v851, 2
  %v987 = vrot.slane %v852, 2
  %v988 = vsel %vm919, %v986, %v987
  %v989 = vrot.slane %v853, 2
  %v990 = vrot.slane %v854, 2
  %v991 = vsel %vm919, %v989, %v990
  %v992 = vrot.slane %v855, 2
  %v993 = vrot.slane %v856, 2
  %v994 = vsel %vm919, %v992, %v993
  %v995 = vrot.slane %v857, 2
  %v996 = vrot.slane %v858, 2
  %v997 = vsel %vm919, %v995, %v996
  %v998 = vrot.slane %v859, 2
  %v999 = vrot.slane %v860, 2
  %v1000 = vsel %vm919, %v998, %v999
  %v1001 = vrot.slane %v861, 2
  %v1002 = vrot.slane %v862, 2
  %v1003 = vsel %vm919, %v1001, %v1002
  %v1060 = vadd.f32 %v745, %v922
  %v1061 = vadd.f32 %v746, %v921
  %v1062 = vadd.f32 %v747, %v925
  %v1063 = vadd.f32 %v748, %v924
  %v1064 = vadd.f32 %v749, %v928
  %v1065 = vadd.f32 %v750, %v927
  %v1066 = vadd.f32 %v751, %v931
  %v1067 = vadd.f32 %v752, %v930
  %v1068 = vadd.f32 %v753, %v934
  %v1069 = vadd.f32 %v754, %v933
  %v1070 = vadd.f32 %v755, %v937
  %v1071 = vadd.f32 %v756, %v936
  %v1072 = vadd.f32 %v757, %v940
  %v1073 = vadd.f32 %v758, %v939
  %v1074 = vadd.f32 %v759, %v943
  %v1075 = vadd.f32 %v760, %v942
  %v1076 = vadd.f32 %v761, %v946
  %v1077 = vadd.f32 %v762, %v945
  %v1078 = vadd.f32 %v763, %v949
  %v1079 = vadd.f32 %v764, %v948
  %v1080 = vadd.f32 %v765, %v952
  %v1081 = vadd.f32 %v766, %v951
  %v1082 = vadd.f32 %v767, %v955
  %v1083 = vadd.f32 %v768, %v954
  %v1084 = vadd.f32 %v769, %v958
  %v1085 = vadd.f32 %v770, %v957
  %v1086 = vadd.f32 %v771, %v961
  %v1087 = vadd.f32 %v772, %v960
  %v1088 = vadd.f32 %v773, %v964
  %v1089 = vadd.f32 %v774, %v963
  %v1090 = vadd.f32 %v775, %v967
  %v1091 = vadd.f32 %v776, %v966
  %v1092 = vadd.f32 %v777, %v970
  %v1093 = vadd.f32 %v778, %v969
  %v1094 = vadd.f32 %v779, %v973
  %v1095 = vadd.f32 %v780, %v972
  %v1096 = vadd.f32 %v781, %v976
  %v1097 = vadd.f32 %v782, %v975
  %v1098 = vadd.f32 %v783, %v979
  %v1099 = vadd.f32 %v784, %v978
  %v1100 = vadd.f32 %v785, %v982
  %v1101 = vadd.f32 %v786, %v981
  %v1102 = vadd.f32 %v787, %v985
  %v1103 = vadd.f32 %v788, %v984
  %v1104 = vadd.f32 %v789, %v988
  %v1105 = vadd.f32 %v790, %v987
  %v1106 = vadd.f32 %v791, %v991
  %v1107 = vadd.f32 %v792, %v990
  %v1108 = vadd.f32 %v793, %v994
  %v1109 = vadd.f32 %v794, %v993
  %v1110 = vadd.f32 %v795, %v997
  %v1111 = vadd.f32 %v796, %v996
  %v1112 = vadd.f32 %v797, %v1000
  %v1113 = vadd.f32 %v798, %v999
  %v1114 = vadd.f32 %v799, %v1003
  %v1115 = vadd.f32 %v800, %v1002
  %1117 = vset.pattern.permute.xlu0 0
  %1118 = vperm.xlu0 %1117, %v42
  %v1119 = vpop.permute.xlu0 %1118
  %1122 = vset.pattern.permute.xlu0 0
  %1123 = vperm.xlu0 %1122, %v43
  %v1124 = vpop.permute.xlu0 %1123
  %1127 = vset.pattern.permute.xlu0 0
  %1128 = vperm.xlu0 %1127, %v74
  %v1129 = vpop.permute.xlu0 %1128
  %1132 = vset.pattern.permute.xlu0 0
  %1133 = vperm.xlu0 %1132, %v75
  %v1134 = vpop.permute.xlu0 %1133
  %v1137 = vlaneseq
  %v1138 = vshrl.u32 %v1137, 7
  %v1139 = vsub.s32 0, %v1138
  %v1140 = vrot.slane %v81, %v1139
  %v1142 = vmul.f32 %v101, %v1140
  %v1143 = vmul.f32 %v106, %v1140
  %v1144 = vmul.f32 %v111, %v1140
  %v1145 = vmul.f32 %v116, %v1140
  %v1146 = vmul.f32 %v121, %v1140
  %v1147 = vmul.f32 %v126, %v1140
  %v1148 = vmul.f32 %v131, %v1140
  %v1149 = vmul.f32 %v136, %v1140
  %v1150 = vmul.f32 %v141, %v1140
  %v1151 = vmul.f32 %v146, %v1140
  %v1152 = vmul.f32 %v151, %v1140
  %v1153 = vmul.f32 %v156, %v1140
  %v1154 = vmul.f32 %v161, %v1140
  %v1155 = vmul.f32 %v166, %v1140
  %v1156 = vmul.f32 %v171, %v1140
  %v1157 = vmul.f32 %v176, %v1140
  %v1158 = vmul.f32 %v181, %v1140
  %v1159 = vmul.f32 %v186, %v1140
  %v1160 = vmul.f32 %v191, %v1140
  %v1161 = vmul.f32 %v196, %v1140
  %v1162 = vmul.f32 %v201, %v1140
  %v1163 = vmul.f32 %v206, %v1140
  %v1164 = vmul.f32 %v211, %v1140
  %v1165 = vmul.f32 %v216, %v1140
  %v1166 = vmul.f32 %v221, %v1140
  %v1167 = vmul.f32 %v226, %v1140
  %v1168 = vmul.f32 %v1119, %v1140
  %v1169 = vmul.f32 %v1124, %v1140
  %v1170 = vmul.f32 %v241, %v1140
  %v1171 = vmul.f32 %v246, %v1140
  %v1172 = vmul.f32 %v251, %v1140
  %v1173 = vmul.f32 %v256, %v1140
  %v1174 = vmul.f32 %v261, %v1140
  %v1175 = vmul.f32 %v266, %v1140
  %v1176 = vmul.f32 %v271, %v1140
  %v1177 = vmul.f32 %v276, %v1140
  %v1178 = vmul.f32 %v281, %v1140
  %v1179 = vmul.f32 %v286, %v1140
  %v1180 = vmul.f32 %v291, %v1140
  %v1181 = vmul.f32 %v296, %v1140
  %v1182 = vmul.f32 %v301, %v1140
  %v1183 = vmul.f32 %v306, %v1140
  %v1184 = vmul.f32 %v311, %v1140
  %v1185 = vmul.f32 %v316, %v1140
  %v1186 = vmul.f32 %v321, %v1140
  %v1187 = vmul.f32 %v326, %v1140
  %v1188 = vmul.f32 %v331, %v1140
  %v1189 = vmul.f32 %v336, %v1140
  %v1190 = vmul.f32 %v341, %v1140
  %v1191 = vmul.f32 %v346, %v1140
  %v1192 = vmul.f32 %v351, %v1140
  %v1193 = vmul.f32 %v356, %v1140
  %v1194 = vmul.f32 %v361, %v1140
  %v1195 = vmul.f32 %v366, %v1140
  %v1196 = vmul.f32 %v1129, %v1140
  %v1197 = vmul.f32 %v1134, %v1140
  %v1198 = vadd.f32 %v1060, %v1142
  %v1199 = vadd.f32 %v1061, %v1143
  %v1200 = vadd.f32 %v1062, %v1144
  %v1201 = vadd.f32 %v1063, %v1145
  %v1202 = vadd.f32 %v1064, %v1146
  %v1203 = vadd.f32 %v1065, %v1147
  %v1204 = vadd.f32 %v1066, %v1148
  %v1205 = vadd.f32 %v1067, %v1149
  %v1206 = vadd.f32 %v1068, %v1150
  %v1207 = vadd.f32 %v1069, %v1151
  %v1208 = vadd.f32 %v1070, %v1152
  %v1209 = vadd.f32 %v1071, %v1153
  %v1210 = vadd.f32 %v1072, %v1154
  %v1211 = vadd.f32 %v1073, %v1155
  %v1212 = vadd.f32 %v1074, %v1156
  %v1213 = vadd.f32 %v1075, %v1157
  %v1214 = vadd.f32 %v1076, %v1158
  %v1215 = vadd.f32 %v1077, %v1159
  %v1216 = vadd.f32 %v1078, %v1160
  %v1217 = vadd.f32 %v1079, %v1161
  %v1218 = vadd.f32 %v1080, %v1162
  %v1219 = vadd.f32 %v1081, %v1163
  %v1220 = vadd.f32 %v1082, %v1164
  %v1221 = vadd.f32 %v1083, %v1165
  %v1222 = vadd.f32 %v1084, %v1166
  %v1223 = vadd.f32 %v1085, %v1167
  %v1224 = vadd.f32 %v1086, %v1168
  %v1225 = vadd.f32 %v1087, %v1169
  %v1226 = vadd.f32 %v1088, %v1170
  %v1227 = vadd.f32 %v1089, %v1171
  %v1228 = vadd.f32 %v1090, %v1172
  %v1229 = vadd.f32 %v1091, %v1173
  %v1230 = vadd.f32 %v1092, %v1174
  %v1231 = vadd.f32 %v1093, %v1175
  %v1232 = vadd.f32 %v1094, %v1176
  %v1233 = vadd.f32 %v1095, %v1177
  %v1234 = vadd.f32 %v1096, %v1178
  %v1235 = vadd.f32 %v1097, %v1179
  %v1236 = vadd.f32 %v1098, %v1180
  %v1237 = vadd.f32 %v1099, %v1181
  %v1238 = vadd.f32 %v1100, %v1182
  %v1239 = vadd.f32 %v1101, %v1183
  %v1240 = vadd.f32 %v1102, %v1184
  %v1241 = vadd.f32 %v1103, %v1185
  %v1242 = vadd.f32 %v1104, %v1186
  %v1243 = vadd.f32 %v1105, %v1187
  %v1244 = vadd.f32 %v1106, %v1188
  %v1245 = vadd.f32 %v1107, %v1189
  %v1246 = vadd.f32 %v1108, %v1190
  %v1247 = vadd.f32 %v1109, %v1191
  %v1248 = vadd.f32 %v1110, %v1192
  %v1249 = vadd.f32 %v1111, %v1193
  %v1250 = vadd.f32 %v1112, %v1194
  %v1251 = vadd.f32 %v1113, %v1195
  %v1252 = vadd.f32 %v1114, %v1196
  %v1253 = vadd.f32 %v1115, %v1197
  %v1255 = vlaneseq
  %v1256 = vshrl.u32 %v1255, 7
  %v1257 = vsub.s32 0, %v1256
  %v1258 = vrot.slane %v82, %v1257
  %v1260 = vmul.f32 %v101, %v1258
  %v1261 = vmul.f32 %v106, %v1258
  %v1262 = vmul.f32 %v111, %v1258
  %v1263 = vmul.f32 %v116, %v1258
  %v1264 = vmul.f32 %v121, %v1258
  %v1265 = vmul.f32 %v126, %v1258
  %v1266 = vmul.f32 %v131, %v1258
  %v1267 = vmul.f32 %v136, %v1258
  %v1268 = vmul.f32 %v141, %v1258
  %v1269 = vmul.f32 %v146, %v1258
  %v1270 = vmul.f32 %v151, %v1258
  %v1271 = vmul.f32 %v156, %v1258
  %v1272 = vmul.f32 %v161, %v1258
  %v1273 = vmul.f32 %v166, %v1258
  %v1274 = vmul.f32 %v171, %v1258
  %v1275 = vmul.f32 %v176, %v1258
  %v1276 = vmul.f32 %v181, %v1258
  %v1277 = vmul.f32 %v186, %v1258
  %v1278 = vmul.f32 %v191, %v1258
  %v1279 = vmul.f32 %v196, %v1258
  %v1280 = vmul.f32 %v201, %v1258
  %v1281 = vmul.f32 %v206, %v1258
  %v1282 = vmul.f32 %v211, %v1258
  %v1283 = vmul.f32 %v216, %v1258
  %v1284 = vmul.f32 %v221, %v1258
  %v1285 = vmul.f32 %v226, %v1258
  %v1286 = vmul.f32 %v1119, %v1258
  %v1287 = vmul.f32 %v1124, %v1258
  %v1288 = vmul.f32 %v241, %v1258
  %v1289 = vmul.f32 %v246, %v1258
  %v1290 = vmul.f32 %v251, %v1258
  %v1291 = vmul.f32 %v256, %v1258
  %v1292 = vmul.f32 %v261, %v1258
  %v1293 = vmul.f32 %v266, %v1258
  %v1294 = vmul.f32 %v271, %v1258
  %v1295 = vmul.f32 %v276, %v1258
  %v1296 = vmul.f32 %v281, %v1258
  %v1297 = vmul.f32 %v286, %v1258
  %v1298 = vmul.f32 %v291, %v1258
  %v1299 = vmul.f32 %v296, %v1258
  %v1300 = vmul.f32 %v301, %v1258
  %v1301 = vmul.f32 %v306, %v1258
  %v1302 = vmul.f32 %v311, %v1258
  %v1303 = vmul.f32 %v316, %v1258
  %v1304 = vmul.f32 %v321, %v1258
  %v1305 = vmul.f32 %v326, %v1258
  %v1306 = vmul.f32 %v331, %v1258
  %v1307 = vmul.f32 %v336, %v1258
  %v1308 = vmul.f32 %v341, %v1258
  %v1309 = vmul.f32 %v346, %v1258
  %v1310 = vmul.f32 %v351, %v1258
  %v1311 = vmul.f32 %v356, %v1258
  %v1312 = vmul.f32 %v361, %v1258
  %v1313 = vmul.f32 %v366, %v1258
  %v1314 = vmul.f32 %v1129, %v1258
  %v1315 = vmul.f32 %v1134, %v1258
  %v1372 = vrot.slane %v1260, 1
  %v1373 = vrot.slane %v1261, 1
  %v1374 = vsel %vm604, %v1372, %v1373
  %v1375 = vrot.slane %v1262, 1
  %v1376 = vrot.slane %v1263, 1
  %v1377 = vsel %vm604, %v1375, %v1376
  %v1378 = vrot.slane %v1264, 1
  %v1379 = vrot.slane %v1265, 1
  %v1380 = vsel %vm604, %v1378, %v1379
  %v1381 = vrot.slane %v1266, 1
  %v1382 = vrot.slane %v1267, 1
  %v1383 = vsel %vm604, %v1381, %v1382
  %v1384 = vrot.slane %v1268, 1
  %v1385 = vrot.slane %v1269, 1
  %v1386 = vsel %vm604, %v1384, %v1385
  %v1387 = vrot.slane %v1270, 1
  %v1388 = vrot.slane %v1271, 1
  %v1389 = vsel %vm604, %v1387, %v1388
  %v1390 = vrot.slane %v1272, 1
  %v1391 = vrot.slane %v1273, 1
  %v1392 = vsel %vm604, %v1390, %v1391
  %v1393 = vrot.slane %v1274, 1
  %v1394 = vrot.slane %v1275, 1
  %v1395 = vsel %vm604, %v1393, %v1394
  %v1396 = vrot.slane %v1276, 1
  %v1397 = vrot.slane %v1277, 1
  %v1398 = vsel %vm604, %v1396, %v1397
  %v1399 = vrot.slane %v1278, 1
  %v1400 = vrot.slane %v1279, 1
  %v1401 = vsel %vm604, %v1399, %v1400
  %v1402 = vrot.slane %v1280, 1
  %v1403 = vrot.slane %v1281, 1
  %v1404 = vsel %vm604, %v1402, %v1403
  %v1405 = vrot.slane %v1282, 1
  %v1406 = vrot.slane %v1283, 1
  %v1407 = vsel %vm604, %v1405, %v1406
  %v1408 = vrot.slane %v1284, 1
  %v1409 = vrot.slane %v1285, 1
  %v1410 = vsel %vm604, %v1408, %v1409
  %v1411 = vrot.slane %v1286, 1
  %v1412 = vrot.slane %v1287, 1
  %v1413 = vsel %vm604, %v1411, %v1412
  %v1414 = vrot.slane %v1288, 1
  %v1415 = vrot.slane %v1289, 1
  %v1416 = vsel %vm604, %v1414, %v1415
  %v1417 = vrot.slane %v1290, 1
  %v1418 = vrot.slane %v1291, 1
  %v1419 = vsel %vm604, %v1417, %v1418
  %v1420 = vrot.slane %v1292, 1
  %v1421 = vrot.slane %v1293, 1
  %v1422 = vsel %vm604, %v1420, %v1421
  %v1423 = vrot.slane %v1294, 1
  %v1424 = vrot.slane %v1295, 1
  %v1425 = vsel %vm604, %v1423, %v1424
  %v1426 = vrot.slane %v1296, 1
  %v1427 = vrot.slane %v1297, 1
  %v1428 = vsel %vm604, %v1426, %v1427
  %v1429 = vrot.slane %v1298, 1
  %v1430 = vrot.slane %v1299, 1
  %v1431 = vsel %vm604, %v1429, %v1430
  %v1432 = vrot.slane %v1300, 1
  %v1433 = vrot.slane %v1301, 1
  %v1434 = vsel %vm604, %v1432, %v1433
  %v1435 = vrot.slane %v1302, 1
  %v1436 = vrot.slane %v1303, 1
  %v1437 = vsel %vm604, %v1435, %v1436
  %v1438 = vrot.slane %v1304, 1
  %v1439 = vrot.slane %v1305, 1
  %v1440 = vsel %vm604, %v1438, %v1439
  %v1441 = vrot.slane %v1306, 1
  %v1442 = vrot.slane %v1307, 1
  %v1443 = vsel %vm604, %v1441, %v1442
  %v1444 = vrot.slane %v1308, 1
  %v1445 = vrot.slane %v1309, 1
  %v1446 = vsel %vm604, %v1444, %v1445
  %v1447 = vrot.slane %v1310, 1
  %v1448 = vrot.slane %v1311, 1
  %v1449 = vsel %vm604, %v1447, %v1448
  %v1450 = vrot.slane %v1312, 1
  %v1451 = vrot.slane %v1313, 1
  %v1452 = vsel %vm604, %v1450, %v1451
  %v1453 = vrot.slane %v1314, 1
  %v1454 = vrot.slane %v1315, 1
  %v1455 = vsel %vm604, %v1453, %v1454
  %v1512 = vadd.f32 %v1198, %v1374
  %v1513 = vadd.f32 %v1199, %v1373
  %v1514 = vadd.f32 %v1200, %v1377
  %v1515 = vadd.f32 %v1201, %v1376
  %v1516 = vadd.f32 %v1202, %v1380
  %v1517 = vadd.f32 %v1203, %v1379
  %v1518 = vadd.f32 %v1204, %v1383
  %v1519 = vadd.f32 %v1205, %v1382
  %v1520 = vadd.f32 %v1206, %v1386
  %v1521 = vadd.f32 %v1207, %v1385
  %v1522 = vadd.f32 %v1208, %v1389
  %v1523 = vadd.f32 %v1209, %v1388
  %v1524 = vadd.f32 %v1210, %v1392
  %v1525 = vadd.f32 %v1211, %v1391
  %v1526 = vadd.f32 %v1212, %v1395
  %v1527 = vadd.f32 %v1213, %v1394
  %v1528 = vadd.f32 %v1214, %v1398
  %v1529 = vadd.f32 %v1215, %v1397
  %v1530 = vadd.f32 %v1216, %v1401
  %v1531 = vadd.f32 %v1217, %v1400
  %v1532 = vadd.f32 %v1218, %v1404
  %v1533 = vadd.f32 %v1219, %v1403
  %v1534 = vadd.f32 %v1220, %v1407
  %v1535 = vadd.f32 %v1221, %v1406
  %v1536 = vadd.f32 %v1222, %v1410
  %v1537 = vadd.f32 %v1223, %v1409
  %v1538 = vadd.f32 %v1224, %v1413
  %v1539 = vadd.f32 %v1225, %v1412
  %v1540 = vadd.f32 %v1226, %v1416
  %v1541 = vadd.f32 %v1227, %v1415
  %v1542 = vadd.f32 %v1228, %v1419
  %v1543 = vadd.f32 %v1229, %v1418
  %v1544 = vadd.f32 %v1230, %v1422
  %v1545 = vadd.f32 %v1231, %v1421
  %v1546 = vadd.f32 %v1232, %v1425
  %v1547 = vadd.f32 %v1233, %v1424
  %v1548 = vadd.f32 %v1234, %v1428
  %v1549 = vadd.f32 %v1235, %v1427
  %v1550 = vadd.f32 %v1236, %v1431
  %v1551 = vadd.f32 %v1237, %v1430
  %v1552 = vadd.f32 %v1238, %v1434
  %v1553 = vadd.f32 %v1239, %v1433
  %v1554 = vadd.f32 %v1240, %v1437
  %v1555 = vadd.f32 %v1241, %v1436
  %v1556 = vadd.f32 %v1242, %v1440
  %v1557 = vadd.f32 %v1243, %v1439
  %v1558 = vadd.f32 %v1244, %v1443
  %v1559 = vadd.f32 %v1245, %v1442
  %v1560 = vadd.f32 %v1246, %v1446
  %v1561 = vadd.f32 %v1247, %v1445
  %v1562 = vadd.f32 %v1248, %v1449
  %v1563 = vadd.f32 %v1249, %v1448
  %v1564 = vadd.f32 %v1250, %v1452
  %v1565 = vadd.f32 %v1251, %v1451
  %v1566 = vadd.f32 %v1252, %v1455
  %v1567 = vadd.f32 %v1253, %v1454
  %v1569 = vlaneseq
  %v1570 = vshrl.u32 %v1569, 7
  %v1571 = vsub.s32 0, %v1570
  %v1572 = vrot.slane %v83, %v1571
  %v1574 = vmul.f32 %v101, %v1572
  %v1575 = vmul.f32 %v106, %v1572
  %v1576 = vmul.f32 %v111, %v1572
  %v1577 = vmul.f32 %v116, %v1572
  %v1578 = vmul.f32 %v121, %v1572
  %v1579 = vmul.f32 %v126, %v1572
  %v1580 = vmul.f32 %v131, %v1572
  %v1581 = vmul.f32 %v136, %v1572
  %v1582 = vmul.f32 %v141, %v1572
  %v1583 = vmul.f32 %v146, %v1572
  %v1584 = vmul.f32 %v151, %v1572
  %v1585 = vmul.f32 %v156, %v1572
  %v1586 = vmul.f32 %v161, %v1572
  %v1587 = vmul.f32 %v166, %v1572
  %v1588 = vmul.f32 %v171, %v1572
  %v1589 = vmul.f32 %v176, %v1572
  %v1590 = vmul.f32 %v181, %v1572
  %v1591 = vmul.f32 %v186, %v1572
  %v1592 = vmul.f32 %v191, %v1572
  %v1593 = vmul.f32 %v196, %v1572
  %v1594 = vmul.f32 %v201, %v1572
  %v1595 = vmul.f32 %v206, %v1572
  %v1596 = vmul.f32 %v211, %v1572
  %v1597 = vmul.f32 %v216, %v1572
  %v1598 = vmul.f32 %v221, %v1572
  %v1599 = vmul.f32 %v226, %v1572
  %v1600 = vmul.f32 %v1119, %v1572
  %v1601 = vmul.f32 %v1124, %v1572
  %v1602 = vmul.f32 %v241, %v1572
  %v1603 = vmul.f32 %v246, %v1572
  %v1604 = vmul.f32 %v251, %v1572
  %v1605 = vmul.f32 %v256, %v1572
  %v1606 = vmul.f32 %v261, %v1572
  %v1607 = vmul.f32 %v266, %v1572
  %v1608 = vmul.f32 %v271, %v1572
  %v1609 = vmul.f32 %v276, %v1572
  %v1610 = vmul.f32 %v281, %v1572
  %v1611 = vmul.f32 %v286, %v1572
  %v1612 = vmul.f32 %v291, %v1572
  %v1613 = vmul.f32 %v296, %v1572
  %v1614 = vmul.f32 %v301, %v1572
  %v1615 = vmul.f32 %v306, %v1572
  %v1616 = vmul.f32 %v311, %v1572
  %v1617 = vmul.f32 %v316, %v1572
  %v1618 = vmul.f32 %v321, %v1572
  %v1619 = vmul.f32 %v326, %v1572
  %v1620 = vmul.f32 %v331, %v1572
  %v1621 = vmul.f32 %v336, %v1572
  %v1622 = vmul.f32 %v341, %v1572
  %v1623 = vmul.f32 %v346, %v1572
  %v1624 = vmul.f32 %v351, %v1572
  %v1625 = vmul.f32 %v356, %v1572
  %v1626 = vmul.f32 %v361, %v1572
  %v1627 = vmul.f32 %v366, %v1572
  %v1628 = vmul.f32 %v1129, %v1572
  %v1629 = vmul.f32 %v1134, %v1572
  %v1686 = vrot.slane %v1574, 2
  %v1687 = vrot.slane %v1575, 2
  %v1688 = vsel %vm919, %v1686, %v1687
  %v1689 = vrot.slane %v1576, 2
  %v1690 = vrot.slane %v1577, 2
  %v1691 = vsel %vm919, %v1689, %v1690
  %v1692 = vrot.slane %v1578, 2
  %v1693 = vrot.slane %v1579, 2
  %v1694 = vsel %vm919, %v1692, %v1693
  %v1695 = vrot.slane %v1580, 2
  %v1696 = vrot.slane %v1581, 2
  %v1697 = vsel %vm919, %v1695, %v1696
  %v1698 = vrot.slane %v1582, 2
  %v1699 = vrot.slane %v1583, 2
  %v1700 = vsel %vm919, %v1698, %v1699
  %v1701 = vrot.slane %v1584, 2
  %v1702 = vrot.slane %v1585, 2
  %v1703 = vsel %vm919, %v1701, %v1702
  %v1704 = vrot.slane %v1586, 2
  %v1705 = vrot.slane %v1587, 2
  %v1706 = vsel %vm919, %v1704, %v1705
  %v1707 = vrot.slane %v1588, 2
  %v1708 = vrot.slane %v1589, 2
  %v1709 = vsel %vm919, %v1707, %v1708
  %v1710 = vrot.slane %v1590, 2
  %v1711 = vrot.slane %v1591, 2
  %v1712 = vsel %vm919, %v1710, %v1711
  %v1713 = vrot.slane %v1592, 2
  %v1714 = vrot.slane %v1593, 2
  %v1715 = vsel %vm919, %v1713, %v1714
  %v1716 = vrot.slane %v1594, 2
  %v1717 = vrot.slane %v1595, 2
  %v1718 = vsel %vm919, %v1716, %v1717
  %v1719 = vrot.slane %v1596, 2
  %v1720 = vrot.slane %v1597, 2
  %v1721 = vsel %vm919, %v1719, %v1720
  %v1722 = vrot.slane %v1598, 2
  %v1723 = vrot.slane %v1599, 2
  %v1724 = vsel %vm919, %v1722, %v1723
  %v1725 = vrot.slane %v1600, 2
  %v1726 = vrot.slane %v1601, 2
  %v1727 = vsel %vm919, %v1725, %v1726
  %v1728 = vrot.slane %v1602, 2
  %v1729 = vrot.slane %v1603, 2
  %v1730 = vsel %vm919, %v1728, %v1729
  %v1731 = vrot.slane %v1604, 2
  %v1732 = vrot.slane %v1605, 2
  %v1733 = vsel %vm919, %v1731, %v1732
  %v1734 = vrot.slane %v1606, 2
  %v1735 = vrot.slane %v1607, 2
  %v1736 = vsel %vm919, %v1734, %v1735
  %v1737 = vrot.slane %v1608, 2
  %v1738 = vrot.slane %v1609, 2
  %v1739 = vsel %vm919, %v1737, %v1738
  %v1740 = vrot.slane %v1610, 2
  %v1741 = vrot.slane %v1611, 2
  %v1742 = vsel %vm919, %v1740, %v1741
  %v1743 = vrot.slane %v1612, 2
  %v1744 = vrot.slane %v1613, 2
  %v1745 = vsel %vm919, %v1743, %v1744
  %v1746 = vrot.slane %v1614, 2
  %v1747 = vrot.slane %v1615, 2
  %v1748 = vsel %vm919, %v1746, %v1747
  %v1749 = vrot.slane %v1616, 2
  %v1750 = vrot.slane %v1617, 2
  %v1751 = vsel %vm919, %v1749, %v1750
  %v1752 = vrot.slane %v1618, 2
  %v1753 = vrot.slane %v1619, 2
  %v1754 = vsel %vm919, %v1752, %v1753
  %v1755 = vrot.slane %v1620, 2
  %v1756 = vrot.slane %v1621, 2
  %v1757 = vsel %vm919, %v1755, %v1756
  %v1758 = vrot.slane %v1622, 2
  %v1759 = vrot.slane %v1623, 2
  %v1760 = vsel %vm919, %v1758, %v1759
  %v1761 = vrot.slane %v1624, 2
  %v1762 = vrot.slane %v1625, 2
  %v1763 = vsel %vm919, %v1761, %v1762
  %v1764 = vrot.slane %v1626, 2
  %v1765 = vrot.slane %v1627, 2
  %v1766 = vsel %vm919, %v1764, %v1765
  %v1767 = vrot.slane %v1628, 2
  %v1768 = vrot.slane %v1629, 2
  %v1769 = vsel %vm919, %v1767, %v1768
  %v1826 = vadd.f32 %v1512, %v1688
  %v1827 = vadd.f32 %v1513, %v1687
  %v1828 = vadd.f32 %v1514, %v1691
  %v1829 = vadd.f32 %v1515, %v1690
  %v1830 = vadd.f32 %v1516, %v1694
  %v1831 = vadd.f32 %v1517, %v1693
  %v1832 = vadd.f32 %v1518, %v1697
  %v1833 = vadd.f32 %v1519, %v1696
  %v1834 = vadd.f32 %v1520, %v1700
  %v1835 = vadd.f32 %v1521, %v1699
  %v1836 = vadd.f32 %v1522, %v1703
  %v1837 = vadd.f32 %v1523, %v1702
  %v1838 = vadd.f32 %v1524, %v1706
  %v1839 = vadd.f32 %v1525, %v1705
  %v1840 = vadd.f32 %v1526, %v1709
  %v1841 = vadd.f32 %v1527, %v1708
  %v1842 = vadd.f32 %v1528, %v1712
  %v1843 = vadd.f32 %v1529, %v1711
  %v1844 = vadd.f32 %v1530, %v1715
  %v1845 = vadd.f32 %v1531, %v1714
  %v1846 = vadd.f32 %v1532, %v1718
  %v1847 = vadd.f32 %v1533, %v1717
  %v1848 = vadd.f32 %v1534, %v1721
  %v1849 = vadd.f32 %v1535, %v1720
  %v1850 = vadd.f32 %v1536, %v1724
  %v1851 = vadd.f32 %v1537, %v1723
  %v1852 = vadd.f32 %v1538, %v1727
  %v1853 = vadd.f32 %v1539, %v1726
  %v1854 = vadd.f32 %v1540, %v1730
  %v1855 = vadd.f32 %v1541, %v1729
  %v1856 = vadd.f32 %v1542, %v1733
  %v1857 = vadd.f32 %v1543, %v1732
  %v1858 = vadd.f32 %v1544, %v1736
  %v1859 = vadd.f32 %v1545, %v1735
  %v1860 = vadd.f32 %v1546, %v1739
  %v1861 = vadd.f32 %v1547, %v1738
  %v1862 = vadd.f32 %v1548, %v1742
  %v1863 = vadd.f32 %v1549, %v1741
  %v1864 = vadd.f32 %v1550, %v1745
  %v1865 = vadd.f32 %v1551, %v1744
  %v1866 = vadd.f32 %v1552, %v1748
  %v1867 = vadd.f32 %v1553, %v1747
  %v1868 = vadd.f32 %v1554, %v1751
  %v1869 = vadd.f32 %v1555, %v1750
  %v1870 = vadd.f32 %v1556, %v1754
  %v1871 = vadd.f32 %v1557, %v1753
  %v1872 = vadd.f32 %v1558, %v1757
  %v1873 = vadd.f32 %v1559, %v1756
  %v1874 = vadd.f32 %v1560, %v1760
  %v1875 = vadd.f32 %v1561, %v1759
  %v1876 = vadd.f32 %v1562, %v1763
  %v1877 = vadd.f32 %v1563, %v1762
  %v1878 = vadd.f32 %v1564, %v1766
  %v1879 = vadd.f32 %v1565, %v1765
  %v1880 = vadd.f32 %v1566, %v1769
  %v1881 = vadd.f32 %v1567, %v1768
  %1883 = vset.pattern.permute.xlu0 0
  %1884 = vperm.xlu0 %1883, %v44
  %v1885 = vpop.permute.xlu0 %1884
  %1888 = vset.pattern.permute.xlu0 0
  %1889 = vperm.xlu0 %1888, %v45
  %v1890 = vpop.permute.xlu0 %1889
  %1893 = vset.pattern.permute.xlu0 0
  %1894 = vperm.xlu0 %1893, %v76
  %v1895 = vpop.permute.xlu0 %1894
  %1898 = vset.pattern.permute.xlu0 0
  %1899 = vperm.xlu0 %1898, %v77
  %v1900 = vpop.permute.xlu0 %1899
  %v1903 = vlaneseq
  %v1904 = vshrl.u32 %v1903, 7
  %v1905 = vsub.s32 0, %v1904
  %v1906 = vrot.slane %v84, %v1905
  %v1908 = vmul.f32 %v111, %v1906
  %v1909 = vmul.f32 %v116, %v1906
  %v1910 = vmul.f32 %v121, %v1906
  %v1911 = vmul.f32 %v126, %v1906
  %v1912 = vmul.f32 %v131, %v1906
  %v1913 = vmul.f32 %v136, %v1906
  %v1914 = vmul.f32 %v141, %v1906
  %v1915 = vmul.f32 %v146, %v1906
  %v1916 = vmul.f32 %v151, %v1906
  %v1917 = vmul.f32 %v156, %v1906
  %v1918 = vmul.f32 %v161, %v1906
  %v1919 = vmul.f32 %v166, %v1906
  %v1920 = vmul.f32 %v171, %v1906
  %v1921 = vmul.f32 %v176, %v1906
  %v1922 = vmul.f32 %v181, %v1906
  %v1923 = vmul.f32 %v186, %v1906
  %v1924 = vmul.f32 %v191, %v1906
  %v1925 = vmul.f32 %v196, %v1906
  %v1926 = vmul.f32 %v201, %v1906
  %v1927 = vmul.f32 %v206, %v1906
  %v1928 = vmul.f32 %v211, %v1906
  %v1929 = vmul.f32 %v216, %v1906
  %v1930 = vmul.f32 %v221, %v1906
  %v1931 = vmul.f32 %v226, %v1906
  %v1932 = vmul.f32 %v1119, %v1906
  %v1933 = vmul.f32 %v1124, %v1906
  %v1934 = vmul.f32 %v1885, %v1906
  %v1935 = vmul.f32 %v1890, %v1906
  %v1936 = vmul.f32 %v251, %v1906
  %v1937 = vmul.f32 %v256, %v1906
  %v1938 = vmul.f32 %v261, %v1906
  %v1939 = vmul.f32 %v266, %v1906
  %v1940 = vmul.f32 %v271, %v1906
  %v1941 = vmul.f32 %v276, %v1906
  %v1942 = vmul.f32 %v281, %v1906
  %v1943 = vmul.f32 %v286, %v1906
  %v1944 = vmul.f32 %v291, %v1906
  %v1945 = vmul.f32 %v296, %v1906
  %v1946 = vmul.f32 %v301, %v1906
  %v1947 = vmul.f32 %v306, %v1906
  %v1948 = vmul.f32 %v311, %v1906
  %v1949 = vmul.f32 %v316, %v1906
  %v1950 = vmul.f32 %v321, %v1906
  %v1951 = vmul.f32 %v326, %v1906
  %v1952 = vmul.f32 %v331, %v1906
  %v1953 = vmul.f32 %v336, %v1906
  %v1954 = vmul.f32 %v341, %v1906
  %v1955 = vmul.f32 %v346, %v1906
  %v1956 = vmul.f32 %v351, %v1906
  %v1957 = vmul.f32 %v356, %v1906
  %v1958 = vmul.f32 %v361, %v1906
  %v1959 = vmul.f32 %v366, %v1906
  %v1960 = vmul.f32 %v1129, %v1906
  %v1961 = vmul.f32 %v1134, %v1906
  %v1962 = vmul.f32 %v1895, %v1906
  %v1963 = vmul.f32 %v1900, %v1906
  %v1964 = vadd.f32 %v1826, %v1908
  %v1965 = vadd.f32 %v1827, %v1909
  %v1966 = vadd.f32 %v1828, %v1910
  %v1967 = vadd.f32 %v1829, %v1911
  %v1968 = vadd.f32 %v1830, %v1912
  %v1969 = vadd.f32 %v1831, %v1913
  %v1970 = vadd.f32 %v1832, %v1914
  %v1971 = vadd.f32 %v1833, %v1915
  %v1972 = vadd.f32 %v1834, %v1916
  %v1973 = vadd.f32 %v1835, %v1917
  %v1974 = vadd.f32 %v1836, %v1918
  %v1975 = vadd.f32 %v1837, %v1919
  %v1976 = vadd.f32 %v1838, %v1920
  %v1977 = vadd.f32 %v1839, %v1921
  %v1978 = vadd.f32 %v1840, %v1922
  %v1979 = vadd.f32 %v1841, %v1923
  %v1980 = vadd.f32 %v1842, %v1924
  %v1981 = vadd.f32 %v1843, %v1925
  %v1982 = vadd.f32 %v1844, %v1926
  %v1983 = vadd.f32 %v1845, %v1927
  %v1984 = vadd.f32 %v1846, %v1928
  %v1985 = vadd.f32 %v1847, %v1929
  %v1986 = vadd.f32 %v1848, %v1930
  %v1987 = vadd.f32 %v1849, %v1931
  %v1988 = vadd.f32 %v1850, %v1932
  %v1989 = vadd.f32 %v1851, %v1933
  %v1990 = vadd.f32 %v1852, %v1934
  %v1991 = vadd.f32 %v1853, %v1935
  %v1992 = vadd.f32 %v1854, %v1936
  %v1993 = vadd.f32 %v1855, %v1937
  %v1994 = vadd.f32 %v1856, %v1938
  %v1995 = vadd.f32 %v1857, %v1939
  %v1996 = vadd.f32 %v1858, %v1940
  %v1997 = vadd.f32 %v1859, %v1941
  %v1998 = vadd.f32 %v1860, %v1942
  %v1999 = vadd.f32 %v1861, %v1943
  %v2000 = vadd.f32 %v1862, %v1944
  %v2001 = vadd.f32 %v1863, %v1945
  %v2002 = vadd.f32 %v1864, %v1946
  %v2003 = vadd.f32 %v1865, %v1947
  %v2004 = vadd.f32 %v1866, %v1948
  %v2005 = vadd.f32 %v1867, %v1949
  %v2006 = vadd.f32 %v1868, %v1950
  %v2007 = vadd.f32 %v1869, %v1951
  %v2008 = vadd.f32 %v1870, %v1952
  %v2009 = vadd.f32 %v1871, %v1953
  %v2010 = vadd.f32 %v1872, %v1954
  %v2011 = vadd.f32 %v1873, %v1955
  %v2012 = vadd.f32 %v1874, %v1956
  %v2013 = vadd.f32 %v1875, %v1957
  %v2014 = vadd.f32 %v1876, %v1958
  %v2015 = vadd.f32 %v1877, %v1959
  %v2016 = vadd.f32 %v1878, %v1960
  %v2017 = vadd.f32 %v1879, %v1961
  %v2018 = vadd.f32 %v1880, %v1962
  %v2019 = vadd.f32 %v1881, %v1963
  %v2021 = vlaneseq
  %v2022 = vshrl.u32 %v2021, 7
  %v2023 = vsub.s32 0, %v2022
  %v2024 = vrot.slane %v85, %v2023
  %v2026 = vmul.f32 %v111, %v2024
  %v2027 = vmul.f32 %v116, %v2024
  %v2028 = vmul.f32 %v121, %v2024
  %v2029 = vmul.f32 %v126, %v2024
  %v2030 = vmul.f32 %v131, %v2024
  %v2031 = vmul.f32 %v136, %v2024
  %v2032 = vmul.f32 %v141, %v2024
  %v2033 = vmul.f32 %v146, %v2024
  %v2034 = vmul.f32 %v151, %v2024
  %v2035 = vmul.f32 %v156, %v2024
  %v2036 = vmul.f32 %v161, %v2024
  %v2037 = vmul.f32 %v166, %v2024
  %v2038 = vmul.f32 %v171, %v2024
  %v2039 = vmul.f32 %v176, %v2024
  %v2040 = vmul.f32 %v181, %v2024
  %v2041 = vmul.f32 %v186, %v2024
  %v2042 = vmul.f32 %v191, %v2024
  %v2043 = vmul.f32 %v196, %v2024
  %v2044 = vmul.f32 %v201, %v2024
  %v2045 = vmul.f32 %v206, %v2024
  %v2046 = vmul.f32 %v211, %v2024
  %v2047 = vmul.f32 %v216, %v2024
  %v2048 = vmul.f32 %v221, %v2024
  %v2049 = vmul.f32 %v226, %v2024
  %v2050 = vmul.f32 %v1119, %v2024
  %v2051 = vmul.f32 %v1124, %v2024
  %v2052 = vmul.f32 %v1885, %v2024
  %v2053 = vmul.f32 %v1890, %v2024
  %v2054 = vmul.f32 %v251, %v2024
  %v2055 = vmul.f32 %v256, %v2024
  %v2056 = vmul.f32 %v261, %v2024
  %v2057 = vmul.f32 %v266, %v2024
  %v2058 = vmul.f32 %v271, %v2024
  %v2059 = vmul.f32 %v276, %v2024
  %v2060 = vmul.f32 %v281, %v2024
  %v2061 = vmul.f32 %v286, %v2024
  %v2062 = vmul.f32 %v291, %v2024
  %v2063 = vmul.f32 %v296, %v2024
  %v2064 = vmul.f32 %v301, %v2024
  %v2065 = vmul.f32 %v306, %v2024
  %v2066 = vmul.f32 %v311, %v2024
  %v2067 = vmul.f32 %v316, %v2024
  %v2068 = vmul.f32 %v321, %v2024
  %v2069 = vmul.f32 %v326, %v2024
  %v2070 = vmul.f32 %v331, %v2024
  %v2071 = vmul.f32 %v336, %v2024
  %v2072 = vmul.f32 %v341, %v2024
  %v2073 = vmul.f32 %v346, %v2024
  %v2074 = vmul.f32 %v351, %v2024
  %v2075 = vmul.f32 %v356, %v2024
  %v2076 = vmul.f32 %v361, %v2024
  %v2077 = vmul.f32 %v366, %v2024
  %v2078 = vmul.f32 %v1129, %v2024
  %v2079 = vmul.f32 %v1134, %v2024
  %v2080 = vmul.f32 %v1895, %v2024
  %v2081 = vmul.f32 %v1900, %v2024
  %v2138 = vrot.slane %v2026, 1
  %v2139 = vrot.slane %v2027, 1
  %v2140 = vsel %vm604, %v2138, %v2139
  %v2141 = vrot.slane %v2028, 1
  %v2142 = vrot.slane %v2029, 1
  %v2143 = vsel %vm604, %v2141, %v2142
  %v2144 = vrot.slane %v2030, 1
  %v2145 = vrot.slane %v2031, 1
  %v2146 = vsel %vm604, %v2144, %v2145
  %v2147 = vrot.slane %v2032, 1
  %v2148 = vrot.slane %v2033, 1
  %v2149 = vsel %vm604, %v2147, %v2148
  %v2150 = vrot.slane %v2034, 1
  %v2151 = vrot.slane %v2035, 1
  %v2152 = vsel %vm604, %v2150, %v2151
  %v2153 = vrot.slane %v2036, 1
  %v2154 = vrot.slane %v2037, 1
  %v2155 = vsel %vm604, %v2153, %v2154
  %v2156 = vrot.slane %v2038, 1
  %v2157 = vrot.slane %v2039, 1
  %v2158 = vsel %vm604, %v2156, %v2157
  %v2159 = vrot.slane %v2040, 1
  %v2160 = vrot.slane %v2041, 1
  %v2161 = vsel %vm604, %v2159, %v2160
  %v2162 = vrot.slane %v2042, 1
  %v2163 = vrot.slane %v2043, 1
  %v2164 = vsel %vm604, %v2162, %v2163
  %v2165 = vrot.slane %v2044, 1
  %v2166 = vrot.slane %v2045, 1
  %v2167 = vsel %vm604, %v2165, %v2166
  %v2168 = vrot.slane %v2046, 1
  %v2169 = vrot.slane %v2047, 1
  %v2170 = vsel %vm604, %v2168, %v2169
  %v2171 = vrot.slane %v2048, 1
  %v2172 = vrot.slane %v2049, 1
  %v2173 = vsel %vm604, %v2171, %v2172
  %v2174 = vrot.slane %v2050, 1
  %v2175 = vrot.slane %v2051, 1
  %v2176 = vsel %vm604, %v2174, %v2175
  %v2177 = vrot.slane %v2052, 1
  %v2178 = vrot.slane %v2053, 1
  %v2179 = vsel %vm604, %v2177, %v2178
  %v2180 = vrot.slane %v2054, 1
  %v2181 = vrot.slane %v2055, 1
  %v2182 = vsel %vm604, %v2180, %v2181
  %v2183 = vrot.slane %v2056, 1
  %v2184 = vrot.slane %v2057, 1
  %v2185 = vsel %vm604, %v2183, %v2184
  %v2186 = vrot.slane %v2058, 1
  %v2187 = vrot.slane %v2059, 1
  %v2188 = vsel %vm604, %v2186, %v2187
  %v2189 = vrot.slane %v2060, 1
  %v2190 = vrot.slane %v2061, 1
  %v2191 = vsel %vm604, %v2189, %v2190
  %v2192 = vrot.slane %v2062, 1
  %v2193 = vrot.slane %v2063, 1
  %v2194 = vsel %vm604, %v2192, %v2193
  %v2195 = vrot.slane %v2064, 1
  %v2196 = vrot.slane %v2065, 1
  %v2197 = vsel %vm604, %v2195, %v2196
  %v2198 = vrot.slane %v2066, 1
  %v2199 = vrot.slane %v2067, 1
  %v2200 = vsel %vm604, %v2198, %v2199
  %v2201 = vrot.slane %v2068, 1
  %v2202 = vrot.slane %v2069, 1
  %v2203 = vsel %vm604, %v2201, %v2202
  %v2204 = vrot.slane %v2070, 1
  %v2205 = vrot.slane %v2071, 1
  %v2206 = vsel %vm604, %v2204, %v2205
  %v2207 = vrot.slane %v2072, 1
  %v2208 = vrot.slane %v2073, 1
  %v2209 = vsel %vm604, %v2207, %v2208
  %v2210 = vrot.slane %v2074, 1
  %v2211 = vrot.slane %v2075, 1
  %v2212 = vsel %vm604, %v2210, %v2211
  %v2213 = vrot.slane %v2076, 1
  %v2214 = vrot.slane %v2077, 1
  %v2215 = vsel %vm604, %v2213, %v2214
  %v2216 = vrot.slane %v2078, 1
  %v2217 = vrot.slane %v2079, 1
  %v2218 = vsel %vm604, %v2216, %v2217
  %v2219 = vrot.slane %v2080, 1
  %v2220 = vrot.slane %v2081, 1
  %v2221 = vsel %vm604, %v2219, %v2220
  %v2278 = vadd.f32 %v1964, %v2140
  %v2279 = vadd.f32 %v1965, %v2139
  %v2280 = vadd.f32 %v1966, %v2143
  %v2281 = vadd.f32 %v1967, %v2142
  %v2282 = vadd.f32 %v1968, %v2146
  %v2283 = vadd.f32 %v1969, %v2145
  %v2284 = vadd.f32 %v1970, %v2149
  %v2285 = vadd.f32 %v1971, %v2148
  %v2286 = vadd.f32 %v1972, %v2152
  %v2287 = vadd.f32 %v1973, %v2151
  %v2288 = vadd.f32 %v1974, %v2155
  %v2289 = vadd.f32 %v1975, %v2154
  %v2290 = vadd.f32 %v1976, %v2158
  %v2291 = vadd.f32 %v1977, %v2157
  %v2292 = vadd.f32 %v1978, %v2161
  %v2293 = vadd.f32 %v1979, %v2160
  %v2294 = vadd.f32 %v1980, %v2164
  %v2295 = vadd.f32 %v1981, %v2163
  %v2296 = vadd.f32 %v1982, %v2167
  %v2297 = vadd.f32 %v1983, %v2166
  %v2298 = vadd.f32 %v1984, %v2170
  %v2299 = vadd.f32 %v1985, %v2169
  %v2300 = vadd.f32 %v1986, %v2173
  %v2301 = vadd.f32 %v1987, %v2172
  %v2302 = vadd.f32 %v1988, %v2176
  %v2303 = vadd.f32 %v1989, %v2175
  %v2304 = vadd.f32 %v1990, %v2179
  %v2305 = vadd.f32 %v1991, %v2178
  %v2306 = vadd.f32 %v1992, %v2182
  %v2307 = vadd.f32 %v1993, %v2181
  %v2308 = vadd.f32 %v1994, %v2185
  %v2309 = vadd.f32 %v1995, %v2184
  %v2310 = vadd.f32 %v1996, %v2188
  %v2311 = vadd.f32 %v1997, %v2187
  %v2312 = vadd.f32 %v1998, %v2191
  %v2313 = vadd.f32 %v1999, %v2190
  %v2314 = vadd.f32 %v2000, %v2194
  %v2315 = vadd.f32 %v2001, %v2193
  %v2316 = vadd.f32 %v2002, %v2197
  %v2317 = vadd.f32 %v2003, %v2196
  %v2318 = vadd.f32 %v2004, %v2200
  %v2319 = vadd.f32 %v2005, %v2199
  %v2320 = vadd.f32 %v2006, %v2203
  %v2321 = vadd.f32 %v2007, %v2202
  %v2322 = vadd.f32 %v2008, %v2206
  %v2323 = vadd.f32 %v2009, %v2205
  %v2324 = vadd.f32 %v2010, %v2209
  %v2325 = vadd.f32 %v2011, %v2208
  %v2326 = vadd.f32 %v2012, %v2212
  %v2327 = vadd.f32 %v2013, %v2211
  %v2328 = vadd.f32 %v2014, %v2215
  %v2329 = vadd.f32 %v2015, %v2214
  %v2330 = vadd.f32 %v2016, %v2218
  %v2331 = vadd.f32 %v2017, %v2217
  %v2332 = vadd.f32 %v2018, %v2221
  %v2333 = vadd.f32 %v2019, %v2220
  %v2335 = vlaneseq
  %v2336 = vshrl.u32 %v2335, 7
  %v2337 = vsub.s32 0, %v2336
  %v2338 = vrot.slane %v86, %v2337
  %v2340 = vmul.f32 %v111, %v2338
  %v2341 = vmul.f32 %v116, %v2338
  %v2342 = vmul.f32 %v121, %v2338
  %v2343 = vmul.f32 %v126, %v2338
  %v2344 = vmul.f32 %v131, %v2338
  %v2345 = vmul.f32 %v136, %v2338
  %v2346 = vmul.f32 %v141, %v2338
  %v2347 = vmul.f32 %v146, %v2338
  %v2348 = vmul.f32 %v151, %v2338
  %v2349 = vmul.f32 %v156, %v2338
  %v2350 = vmul.f32 %v161, %v2338
  %v2351 = vmul.f32 %v166, %v2338
  %v2352 = vmul.f32 %v171, %v2338
  %v2353 = vmul.f32 %v176, %v2338
  %v2354 = vmul.f32 %v181, %v2338
  %v2355 = vmul.f32 %v186, %v2338
  %v2356 = vmul.f32 %v191, %v2338
  %v2357 = vmul.f32 %v196, %v2338
  %v2358 = vmul.f32 %v201, %v2338
  %v2359 = vmul.f32 %v206, %v2338
  %v2360 = vmul.f32 %v211, %v2338
  %v2361 = vmul.f32 %v216, %v2338
  %v2362 = vmul.f32 %v221, %v2338
  %v2363 = vmul.f32 %v226, %v2338
  %v2364 = vmul.f32 %v1119, %v2338
  %v2365 = vmul.f32 %v1124, %v2338
  %v2366 = vmul.f32 %v1885, %v2338
  %v2367 = vmul.f32 %v1890, %v2338
  %v2368 = vmul.f32 %v251, %v2338
  %v2369 = vmul.f32 %v256, %v2338
  %v2370 = vmul.f32 %v261, %v2338
  %v2371 = vmul.f32 %v266, %v2338
  %v2372 = vmul.f32 %v271, %v2338
  %v2373 = vmul.f32 %v276, %v2338
  %v2374 = vmul.f32 %v281, %v2338
  %v2375 = vmul.f32 %v286, %v2338
  %v2376 = vmul.f32 %v291, %v2338
  %v2377 = vmul.f32 %v296, %v2338
  %v2378 = vmul.f32 %v301, %v2338
  %v2379 = vmul.f32 %v306, %v2338
  %v2380 = vmul.f32 %v311, %v2338
  %v2381 = vmul.f32 %v316, %v2338
  %v2382 = vmul.f32 %v321, %v2338
  %v2383 = vmul.f32 %v326, %v2338
  %v2384 = vmul.f32 %v331, %v2338
  %v2385 = vmul.f32 %v336, %v2338
  %v2386 = vmul.f32 %v341, %v2338
  %v2387 = vmul.f32 %v346, %v2338
  %v2388 = vmul.f32 %v351, %v2338
  %v2389 = vmul.f32 %v356, %v2338
  %v2390 = vmul.f32 %v361, %v2338
  %v2391 = vmul.f32 %v366, %v2338
  %v2392 = vmul.f32 %v1129, %v2338
  %v2393 = vmul.f32 %v1134, %v2338
  %v2394 = vmul.f32 %v1895, %v2338
  %v2395 = vmul.f32 %v1900, %v2338
  %v2452 = vrot.slane %v2340, 2
  %v2453 = vrot.slane %v2341, 2
  %v2454 = vsel %vm919, %v2452, %v2453
  %v2455 = vrot.slane %v2342, 2
  %v2456 = vrot.slane %v2343, 2
  %v2457 = vsel %vm919, %v2455, %v2456
  %v2458 = vrot.slane %v2344, 2
  %v2459 = vrot.slane %v2345, 2
  %v2460 = vsel %vm919, %v2458, %v2459
  %v2461 = vrot.slane %v2346, 2
  %v2462 = vrot.slane %v2347, 2
  %v2463 = vsel %vm919, %v2461, %v2462
  %v2464 = vrot.slane %v2348, 2
  %v2465 = vrot.slane %v2349, 2
  %v2466 = vsel %vm919, %v2464, %v2465
  %v2467 = vrot.slane %v2350, 2
  %v2468 = vrot.slane %v2351, 2
  %v2469 = vsel %vm919, %v2467, %v2468
  %v2470 = vrot.slane %v2352, 2
  %v2471 = vrot.slane %v2353, 2
  %v2472 = vsel %vm919, %v2470, %v2471
  %v2473 = vrot.slane %v2354, 2
  %v2474 = vrot.slane %v2355, 2
  %v2475 = vsel %vm919, %v2473, %v2474
  %v2476 = vrot.slane %v2356, 2
  %v2477 = vrot.slane %v2357, 2
  %v2478 = vsel %vm919, %v2476, %v2477
  %v2479 = vrot.slane %v2358, 2
  %v2480 = vrot.slane %v2359, 2
  %v2481 = vsel %vm919, %v2479, %v2480
  %v2482 = vrot.slane %v2360, 2
  %v2483 = vrot.slane %v2361, 2
  %v2484 = vsel %vm919, %v2482, %v2483
  %v2485 = vrot.slane %v2362, 2
  %v2486 = vrot.slane %v2363, 2
  %v2487 = vsel %vm919, %v2485, %v2486
  %v2488 = vrot.slane %v2364, 2
  %v2489 = vrot.slane %v2365, 2
  %v2490 = vsel %vm919, %v2488, %v2489
  %v2491 = vrot.slane %v2366, 2
  %v2492 = vrot.slane %v2367, 2
  %v2493 = vsel %vm919, %v2491, %v2492
  %v2494 = vrot.slane %v2368, 2
  %v2495 = vrot.slane %v2369, 2
  %v2496 = vsel %vm919, %v2494, %v2495
  %v2497 = vrot.slane %v2370, 2
  %v2498 = vrot.slane %v2371, 2
  %v2499 = vsel %vm919, %v2497, %v2498
  %v2500 = vrot.slane %v2372, 2
  %v2501 = vrot.slane %v2373, 2
  %v2502 = vsel %vm919, %v2500, %v2501
  %v2503 = vrot.slane %v2374, 2
  %v2504 = vrot.slane %v2375, 2
  %v2505 = vsel %vm919, %v2503, %v2504
  %v2506 = vrot.slane %v2376, 2
  %v2507 = vrot.slane %v2377, 2
  %v2508 = vsel %vm919, %v2506, %v2507
  %v2509 = vrot.slane %v2378, 2
  %v2510 = vrot.slane %v2379, 2
  %v2511 = vsel %vm919, %v2509, %v2510
  %v2512 = vrot.slane %v2380, 2
  %v2513 = vrot.slane %v2381, 2
  %v2514 = vsel %vm919, %v2512, %v2513
  %v2515 = vrot.slane %v2382, 2
  %v2516 = vrot.slane %v2383, 2
  %v2517 = vsel %vm919, %v2515, %v2516
  %v2518 = vrot.slane %v2384, 2
  %v2519 = vrot.slane %v2385, 2
  %v2520 = vsel %vm919, %v2518, %v2519
  %v2521 = vrot.slane %v2386, 2
  %v2522 = vrot.slane %v2387, 2
  %v2523 = vsel %vm919, %v2521, %v2522
  %v2524 = vrot.slane %v2388, 2
  %v2525 = vrot.slane %v2389, 2
  %v2526 = vsel %vm919, %v2524, %v2525
  %v2527 = vrot.slane %v2390, 2
  %v2528 = vrot.slane %v2391, 2
  %v2529 = vsel %vm919, %v2527, %v2528
  %v2530 = vrot.slane %v2392, 2
  %v2531 = vrot.slane %v2393, 2
  %v2532 = vsel %vm919, %v2530, %v2531
  %v2533 = vrot.slane %v2394, 2
  %v2534 = vrot.slane %v2395, 2
  %v2535 = vsel %vm919, %v2533, %v2534
  %v2592 = vadd.f32 %v2278, %v2454
  %v2593 = vadd.f32 %v2279, %v2453
  %v2594 = vadd.f32 %v2280, %v2457
  %v2595 = vadd.f32 %v2281, %v2456
  %v2596 = vadd.f32 %v2282, %v2460
  %v2597 = vadd.f32 %v2283, %v2459
  %v2598 = vadd.f32 %v2284, %v2463
  %v2599 = vadd.f32 %v2285, %v2462
  %v2600 = vadd.f32 %v2286, %v2466
  %v2601 = vadd.f32 %v2287, %v2465
  %v2602 = vadd.f32 %v2288, %v2469
  %v2603 = vadd.f32 %v2289, %v2468
  %v2604 = vadd.f32 %v2290, %v2472
  %v2605 = vadd.f32 %v2291, %v2471
  %v2606 = vadd.f32 %v2292, %v2475
  %v2607 = vadd.f32 %v2293, %v2474
  %v2608 = vadd.f32 %v2294, %v2478
  %v2609 = vadd.f32 %v2295, %v2477
  %v2610 = vadd.f32 %v2296, %v2481
  %v2611 = vadd.f32 %v2297, %v2480
  %v2612 = vadd.f32 %v2298, %v2484
  %v2613 = vadd.f32 %v2299, %v2483
  %v2614 = vadd.f32 %v2300, %v2487
  %v2615 = vadd.f32 %v2301, %v2486
  %v2616 = vadd.f32 %v2302, %v2490
  %v2617 = vadd.f32 %v2303, %v2489
  %v2618 = vadd.f32 %v2304, %v2493
  %v2619 = vadd.f32 %v2305, %v2492
  %v2620 = vadd.f32 %v2306, %v2496
  %v2621 = vadd.f32 %v2307, %v2495
  %v2622 = vadd.f32 %v2308, %v2499
  %v2623 = vadd.f32 %v2309, %v2498
  %v2624 = vadd.f32 %v2310, %v2502
  %v2625 = vadd.f32 %v2311, %v2501
  %v2626 = vadd.f32 %v2312, %v2505
  %v2627 = vadd.f32 %v2313, %v2504
  %v2628 = vadd.f32 %v2314, %v2508
  %v2629 = vadd.f32 %v2315, %v2507
  %v2630 = vadd.f32 %v2316, %v2511
  %v2631 = vadd.f32 %v2317, %v2510
  %v2632 = vadd.f32 %v2318, %v2514
  %v2633 = vadd.f32 %v2319, %v2513
  %v2634 = vadd.f32 %v2320, %v2517
  %v2635 = vadd.f32 %v2321, %v2516
  %v2636 = vadd.f32 %v2322, %v2520
  %v2637 = vadd.f32 %v2323, %v2519
  %v2638 = vadd.f32 %v2324, %v2523
  %v2639 = vadd.f32 %v2325, %v2522
  %v2640 = vadd.f32 %v2326, %v2526
  %v2641 = vadd.f32 %v2327, %v2525
  %v2642 = vadd.f32 %v2328, %v2529
  %v2643 = vadd.f32 %v2329, %v2528
  %v2644 = vadd.f32 %v2330, %v2532
  %v2645 = vadd.f32 %v2331, %v2531
  %v2646 = vadd.f32 %v2332, %v2535
  %v2647 = vadd.f32 %v2333, %v2534
  %v2649 = vlaneseq
  %v2650 = vshrl.u32 %v2649, 7
  %v2651 = vsub.s32 0, %v2650
  %v2652 = vrot.slane %v87, %v2651
  %v2654 = vadd.f32 %v2592, %v2652
  %v2655 = vadd.f32 %v2593, %v2652
  %v2656 = vadd.f32 %v2594, %v2652
  %v2657 = vadd.f32 %v2595, %v2652
  %v2658 = vadd.f32 %v2596, %v2652
  %v2659 = vadd.f32 %v2597, %v2652
  %v2660 = vadd.f32 %v2598, %v2652
  %v2661 = vadd.f32 %v2599, %v2652
  %v2662 = vadd.f32 %v2600, %v2652
  %v2663 = vadd.f32 %v2601, %v2652
  %v2664 = vadd.f32 %v2602, %v2652
  %v2665 = vadd.f32 %v2603, %v2652
  %v2666 = vadd.f32 %v2604, %v2652
  %v2667 = vadd.f32 %v2605, %v2652
  %v2668 = vadd.f32 %v2606, %v2652
  %v2669 = vadd.f32 %v2607, %v2652
  %v2670 = vadd.f32 %v2608, %v2652
  %v2671 = vadd.f32 %v2609, %v2652
  %v2672 = vadd.f32 %v2610, %v2652
  %v2673 = vadd.f32 %v2611, %v2652
  %v2674 = vadd.f32 %v2612, %v2652
  %v2675 = vadd.f32 %v2613, %v2652
  %v2676 = vadd.f32 %v2614, %v2652
  %v2677 = vadd.f32 %v2615, %v2652
  %v2678 = vadd.f32 %v2616, %v2652
  %v2679 = vadd.f32 %v2617, %v2652
  %v2680 = vadd.f32 %v2618, %v2652
  %v2681 = vadd.f32 %v2619, %v2652
  %v2682 = vadd.f32 %v2620, %v2652
  %v2683 = vadd.f32 %v2621, %v2652
  %v2684 = vadd.f32 %v2622, %v2652
  %v2685 = vadd.f32 %v2623, %v2652
  %v2686 = vadd.f32 %v2624, %v2652
  %v2687 = vadd.f32 %v2625, %v2652
  %v2688 = vadd.f32 %v2626, %v2652
  %v2689 = vadd.f32 %v2627, %v2652
  %v2690 = vadd.f32 %v2628, %v2652
  %v2691 = vadd.f32 %v2629, %v2652
  %v2692 = vadd.f32 %v2630, %v2652
  %v2693 = vadd.f32 %v2631, %v2652
  %v2694 = vadd.f32 %v2632, %v2652
  %v2695 = vadd.f32 %v2633, %v2652
  %v2696 = vadd.f32 %v2634, %v2652
  %v2697 = vadd.f32 %v2635, %v2652
  %v2698 = vadd.f32 %v2636, %v2652
  %v2699 = vadd.f32 %v2637, %v2652
  %v2700 = vadd.f32 %v2638, %v2652
  %v2701 = vadd.f32 %v2639, %v2652
  %v2702 = vadd.f32 %v2640, %v2652
  %v2703 = vadd.f32 %v2641, %v2652
  %v2704 = vadd.f32 %v2642, %v2652
  %v2705 = vadd.f32 %v2643, %v2652
  %v2706 = vadd.f32 %v2644, %v2652
  %v2707 = vadd.f32 %v2645, %v2652
  %v2708 = vadd.f32 %v2646, %v2652
  %v2709 = vadd.f32 %v2647, %v2652
  %v2758 = vrot.slane %v2654, 1
  %v2759 = vrot.slane %v2655, 1
  %v2760 = vsel %vm604, %v2758, %v2759
  %v2761 = vrot.slane %v2656, 1
  %v2762 = vrot.slane %v2657, 1
  %v2763 = vsel %vm604, %v2761, %v2762
  %v2764 = vrot.slane %v2658, 1
  %v2765 = vrot.slane %v2659, 1
  %v2766 = vsel %vm604, %v2764, %v2765
  %v2767 = vrot.slane %v2660, 1
  %v2768 = vrot.slane %v2661, 1
  %v2769 = vsel %vm604, %v2767, %v2768
  %v2770 = vrot.slane %v2662, 1
  %v2771 = vrot.slane %v2663, 1
  %v2772 = vsel %vm604, %v2770, %v2771
  %v2773 = vrot.slane %v2664, 1
  %v2774 = vrot.slane %v2665, 1
  %v2775 = vsel %vm604, %v2773, %v2774
  %v2776 = vrot.slane %v2666, 1
  %v2777 = vrot.slane %v2667, 1
  %v2778 = vsel %vm604, %v2776, %v2777
  %v2779 = vrot.slane %v2668, 1
  %v2780 = vrot.slane %v2669, 1
  %v2781 = vsel %vm604, %v2779, %v2780
  %v2782 = vrot.slane %v2670, 1
  %v2783 = vrot.slane %v2671, 1
  %v2784 = vsel %vm604, %v2782, %v2783
  %v2785 = vrot.slane %v2672, 1
  %v2786 = vrot.slane %v2673, 1
  %v2787 = vsel %vm604, %v2785, %v2786
  %v2788 = vrot.slane %v2674, 1
  %v2789 = vrot.slane %v2675, 1
  %v2790 = vsel %vm604, %v2788, %v2789
  %v2791 = vrot.slane %v2676, 1
  %v2792 = vrot.slane %v2677, 1
  %v2793 = vsel %vm604, %v2791, %v2792
  %v2794 = vrot.slane %v2682, 1
  %v2795 = vrot.slane %v2683, 1
  %v2796 = vsel %vm604, %v2794, %v2795
  %v2797 = vrot.slane %v2684, 1
  %v2798 = vrot.slane %v2685, 1
  %v2799 = vsel %vm604, %v2797, %v2798
  %v2800 = vrot.slane %v2686, 1
  %v2801 = vrot.slane %v2687, 1
  %v2802 = vsel %vm604, %v2800, %v2801
  %v2803 = vrot.slane %v2688, 1
  %v2804 = vrot.slane %v2689, 1
  %v2805 = vsel %vm604, %v2803, %v2804
  %v2806 = vrot.slane %v2690, 1
  %v2807 = vrot.slane %v2691, 1
  %v2808 = vsel %vm604, %v2806, %v2807
  %v2809 = vrot.slane %v2692, 1
  %v2810 = vrot.slane %v2693, 1
  %v2811 = vsel %vm604, %v2809, %v2810
  %v2812 = vrot.slane %v2694, 1
  %v2813 = vrot.slane %v2695, 1
  %v2814 = vsel %vm604, %v2812, %v2813
  %v2815 = vrot.slane %v2696, 1
  %v2816 = vrot.slane %v2697, 1
  %v2817 = vsel %vm604, %v2815, %v2816
  %v2818 = vrot.slane %v2698, 1
  %v2819 = vrot.slane %v2699, 1
  %v2820 = vsel %vm604, %v2818, %v2819
  %v2821 = vrot.slane %v2700, 1
  %v2822 = vrot.slane %v2701, 1
  %v2823 = vsel %vm604, %v2821, %v2822
  %v2824 = vrot.slane %v2702, 1
  %v2825 = vrot.slane %v2703, 1
  %v2826 = vsel %vm604, %v2824, %v2825
  %v2827 = vrot.slane %v2704, 1
  %v2828 = vrot.slane %v2705, 1
  %v2829 = vsel %vm604, %v2827, %v2828
  %v2878 = vmax.f32 %v2654, %v2760
  %v2879 = vmax.f32 %v2655, %v2759
  %v2880 = vmax.f32 %v2656, %v2763
  %v2881 = vmax.f32 %v2657, %v2762
  %v2882 = vmax.f32 %v2658, %v2766
  %v2883 = vmax.f32 %v2659, %v2765
  %v2884 = vmax.f32 %v2660, %v2769
  %v2885 = vmax.f32 %v2661, %v2768
  %v2886 = vmax.f32 %v2662, %v2772
  %v2887 = vmax.f32 %v2663, %v2771
  %v2888 = vmax.f32 %v2664, %v2775
  %v2889 = vmax.f32 %v2665, %v2774
  %v2890 = vmax.f32 %v2666, %v2778
  %v2891 = vmax.f32 %v2667, %v2777
  %v2892 = vmax.f32 %v2668, %v2781
  %v2893 = vmax.f32 %v2669, %v2780
  %v2894 = vmax.f32 %v2670, %v2784
  %v2895 = vmax.f32 %v2671, %v2783
  %v2896 = vmax.f32 %v2672, %v2787
  %v2897 = vmax.f32 %v2673, %v2786
  %v2898 = vmax.f32 %v2674, %v2790
  %v2899 = vmax.f32 %v2675, %v2789
  %v2900 = vmax.f32 %v2676, %v2793
  %v2901 = vmax.f32 %v2677, %v2792
  %v2902 = vmax.f32 %v2682, %v2796
  %v2903 = vmax.f32 %v2683, %v2795
  %v2904 = vmax.f32 %v2684, %v2799
  %v2905 = vmax.f32 %v2685, %v2798
  %v2906 = vmax.f32 %v2686, %v2802
  %v2907 = vmax.f32 %v2687, %v2801
  %v2908 = vmax.f32 %v2688, %v2805
  %v2909 = vmax.f32 %v2689, %v2804
  %v2910 = vmax.f32 %v2690, %v2808
  %v2911 = vmax.f32 %v2691, %v2807
  %v2912 = vmax.f32 %v2692, %v2811
  %v2913 = vmax.f32 %v2693, %v2810
  %v2914 = vmax.f32 %v2694, %v2814
  %v2915 = vmax.f32 %v2695, %v2813
  %v2916 = vmax.f32 %v2696, %v2817
  %v2917 = vmax.f32 %v2697, %v2816
  %v2918 = vmax.f32 %v2698, %v2820
  %v2919 = vmax.f32 %v2699, %v2819
  %v2920 = vmax.f32 %v2700, %v2823
  %v2921 = vmax.f32 %v2701, %v2822
  %v2922 = vmax.f32 %v2702, %v2826
  %v2923 = vmax.f32 %v2703, %v2825
  %v2924 = vmax.f32 %v2704, %v2829
  %v2925 = vmax.f32 %v2705, %v2828
  %v2926 = vrot.slane %v2654, 2
  %v2927 = vrot.slane %v2655, 2
  %v2928 = vsel %vm919, %v2926, %v2927
  %v2929 = vrot.slane %v2656, 2
  %v2930 = vrot.slane %v2657, 2
  %v2931 = vsel %vm919, %v2929, %v2930
  %v2932 = vrot.slane %v2658, 2
  %v2933 = vrot.slane %v2659, 2
  %v2934 = vsel %vm919, %v2932, %v2933
  %v2935 = vrot.slane %v2660, 2
  %v2936 = vrot.slane %v2661, 2
  %v2937 = vsel %vm919, %v2935, %v2936
  %v2938 = vrot.slane %v2662, 2
  %v2939 = vrot.slane %v2663, 2
  %v2940 = vsel %vm919, %v2938, %v2939
  %v2941 = vrot.slane %v2664, 2
  %v2942 = vrot.slane %v2665, 2
  %v2943 = vsel %vm919, %v2941, %v2942
  %v2944 = vrot.slane %v2666, 2
  %v2945 = vrot.slane %v2667, 2
  %v2946 = vsel %vm919, %v2944, %v2945
  %v2947 = vrot.slane %v2668, 2
  %v2948 = vrot.slane %v2669, 2
  %v2949 = vsel %vm919, %v2947, %v2948
  %v2950 = vrot.slane %v2670, 2
  %v2951 = vrot.slane %v2671, 2
  %v2952 = vsel %vm919, %v2950, %v2951
  %v2953 = vrot.slane %v2672, 2
  %v2954 = vrot.slane %v2673, 2
  %v2955 = vsel %vm919, %v2953, %v2954
  %v2956 = vrot.slane %v2674, 2
  %v2957 = vrot.slane %v2675, 2
  %v2958 = vsel %vm919, %v2956, %v2957
  %v2959 = vrot.slane %v2676, 2
  %v2960 = vrot.slane %v2677, 2
  %v2961 = vsel %vm919, %v2959, %v2960
  %v2962 = vrot.slane %v2682, 2
  %v2963 = vrot.slane %v2683, 2
  %v2964 = vsel %vm919, %v2962, %v2963
  %v2965 = vrot.slane %v2684, 2
  %v2966 = vrot.slane %v2685, 2
  %v2967 = vsel %vm919, %v2965, %v2966
  %v2968 = vrot.slane %v2686, 2
  %v2969 = vrot.slane %v2687, 2
  %v2970 = vsel %vm919, %v2968, %v2969
  %v2971 = vrot.slane %v2688, 2
  %v2972 = vrot.slane %v2689, 2
  %v2973 = vsel %vm919, %v2971, %v2972
  %v2974 = vrot.slane %v2690, 2
  %v2975 = vrot.slane %v2691, 2
  %v2976 = vsel %vm919, %v2974, %v2975
  %v2977 = vrot.slane %v2692, 2
  %v2978 = vrot.slane %v2693, 2
  %v2979 = vsel %vm919, %v2977, %v2978
  %v2980 = vrot.slane %v2694, 2
  %v2981 = vrot.slane %v2695, 2
  %v2982 = vsel %vm919, %v2980, %v2981
  %v2983 = vrot.slane %v2696, 2
  %v2984 = vrot.slane %v2697, 2
  %v2985 = vsel %vm919, %v2983, %v2984
  %v2986 = vrot.slane %v2698, 2
  %v2987 = vrot.slane %v2699, 2
  %v2988 = vsel %vm919, %v2986, %v2987
  %v2989 = vrot.slane %v2700, 2
  %v2990 = vrot.slane %v2701, 2
  %v2991 = vsel %vm919, %v2989, %v2990
  %v2992 = vrot.slane %v2702, 2
  %v2993 = vrot.slane %v2703, 2
  %v2994 = vsel %vm919, %v2992, %v2993
  %v2995 = vrot.slane %v2704, 2
  %v2996 = vrot.slane %v2705, 2
  %v2997 = vsel %vm919, %v2995, %v2996
  %v3046 = vmax.f32 %v2878, %v2928
  %v3047 = vmax.f32 %v2879, %v2927
  %v3048 = vmax.f32 %v2880, %v2931
  %v3049 = vmax.f32 %v2881, %v2930
  %v3050 = vmax.f32 %v2882, %v2934
  %v3051 = vmax.f32 %v2883, %v2933
  %v3052 = vmax.f32 %v2884, %v2937
  %v3053 = vmax.f32 %v2885, %v2936
  %v3054 = vmax.f32 %v2886, %v2940
  %v3055 = vmax.f32 %v2887, %v2939
  %v3056 = vmax.f32 %v2888, %v2943
  %v3057 = vmax.f32 %v2889, %v2942
  %v3058 = vmax.f32 %v2890, %v2946
  %v3059 = vmax.f32 %v2891, %v2945
  %v3060 = vmax.f32 %v2892, %v2949
  %v3061 = vmax.f32 %v2893, %v2948
  %v3062 = vmax.f32 %v2894, %v2952
  %v3063 = vmax.f32 %v2895, %v2951
  %v3064 = vmax.f32 %v2896, %v2955
  %v3065 = vmax.f32 %v2897, %v2954
  %v3066 = vmax.f32 %v2898, %v2958
  %v3067 = vmax.f32 %v2899, %v2957
  %v3068 = vmax.f32 %v2900, %v2961
  %v3069 = vmax.f32 %v2901, %v2960
  %v3070 = vmax.f32 %v2902, %v2964
  %v3071 = vmax.f32 %v2903, %v2963
  %v3072 = vmax.f32 %v2904, %v2967
  %v3073 = vmax.f32 %v2905, %v2966
  %v3074 = vmax.f32 %v2906, %v2970
  %v3075 = vmax.f32 %v2907, %v2969
  %v3076 = vmax.f32 %v2908, %v2973
  %v3077 = vmax.f32 %v2909, %v2972
  %v3078 = vmax.f32 %v2910, %v2976
  %v3079 = vmax.f32 %v2911, %v2975
  %v3080 = vmax.f32 %v2912, %v2979
  %v3081 = vmax.f32 %v2913, %v2978
  %v3082 = vmax.f32 %v2914, %v2982
  %v3083 = vmax.f32 %v2915, %v2981
  %v3084 = vmax.f32 %v2916, %v2985
  %v3085 = vmax.f32 %v2917, %v2984
  %v3086 = vmax.f32 %v2918, %v2988
  %v3087 = vmax.f32 %v2919, %v2987
  %v3088 = vmax.f32 %v2920, %v2991
  %v3089 = vmax.f32 %v2921, %v2990
  %v3090 = vmax.f32 %v2922, %v2994
  %v3091 = vmax.f32 %v2923, %v2993
  %v3092 = vmax.f32 %v2924, %v2997
  %v3093 = vmax.f32 %v2925, %v2996
  %v3094 = vmax.f32 %v3046, %v2656
  %v3095 = vmax.f32 %v3047, %v2657
  %v3096 = vmax.f32 %v3048, %v2658
  %v3097 = vmax.f32 %v3049, %v2659
  %v3098 = vmax.f32 %v3050, %v2660
  %v3099 = vmax.f32 %v3051, %v2661
  %v3100 = vmax.f32 %v3052, %v2662
  %v3101 = vmax.f32 %v3053, %v2663
  %v3102 = vmax.f32 %v3054, %v2664
  %v3103 = vmax.f32 %v3055, %v2665
  %v3104 = vmax.f32 %v3056, %v2666
  %v3105 = vmax.f32 %v3057, %v2667
  %v3106 = vmax.f32 %v3058, %v2668
  %v3107 = vmax.f32 %v3059, %v2669
  %v3108 = vmax.f32 %v3060, %v2670
  %v3109 = vmax.f32 %v3061, %v2671
  %v3110 = vmax.f32 %v3062, %v2672
  %v3111 = vmax.f32 %v3063, %v2673
  %v3112 = vmax.f32 %v3064, %v2674
  %v3113 = vmax.f32 %v3065, %v2675
  %v3114 = vmax.f32 %v3066, %v2676
  %v3115 = vmax.f32 %v3067, %v2677
  %v3116 = vmax.f32 %v3068, %v2678
  %v3117 = vmax.f32 %v3069, %v2679
  %v3118 = vmax.f32 %v3070, %v2684
  %v3119 = vmax.f32 %v3071, %v2685
  %v3120 = vmax.f32 %v3072, %v2686
  %v3121 = vmax.f32 %v3073, %v2687
  %v3122 = vmax.f32 %v3074, %v2688
  %v3123 = vmax.f32 %v3075, %v2689
  %v3124 = vmax.f32 %v3076, %v2690
  %v3125 = vmax.f32 %v3077, %v2691
  %v3126 = vmax.f32 %v3078, %v2692
  %v3127 = vmax.f32 %v3079, %v2693
  %v3128 = vmax.f32 %v3080, %v2694
  %v3129 = vmax.f32 %v3081, %v2695
  %v3130 = vmax.f32 %v3082, %v2696
  %v3131 = vmax.f32 %v3083, %v2697
  %v3132 = vmax.f32 %v3084, %v2698
  %v3133 = vmax.f32 %v3085, %v2699
  %v3134 = vmax.f32 %v3086, %v2700
  %v3135 = vmax.f32 %v3087, %v2701
  %v3136 = vmax.f32 %v3088, %v2702
  %v3137 = vmax.f32 %v3089, %v2703
  %v3138 = vmax.f32 %v3090, %v2704
  %v3139 = vmax.f32 %v3091, %v2705
  %v3140 = vmax.f32 %v3092, %v2706
  %v3141 = vmax.f32 %v3093, %v2707
  %v3146 = vrot.slane %v2678, 1
  %v3147 = vrot.slane %v2679, 1
  %v3148 = vsel %vm604, %v3146, %v3147
  %v3149 = vrot.slane %v2706, 1
  %v3150 = vrot.slane %v2707, 1
  %v3151 = vsel %vm604, %v3149, %v3150
  %v3156 = vmax.f32 %v3094, %v2763
  %v3157 = vmax.f32 %v3095, %v2762
  %v3158 = vmax.f32 %v3096, %v2766
  %v3159 = vmax.f32 %v3097, %v2765
  %v3160 = vmax.f32 %v3098, %v2769
  %v3161 = vmax.f32 %v3099, %v2768
  %v3162 = vmax.f32 %v3100, %v2772
  %v3163 = vmax.f32 %v3101, %v2771
  %v3164 = vmax.f32 %v3102, %v2775
  %v3165 = vmax.f32 %v3103, %v2774
  %v3166 = vmax.f32 %v3104, %v2778
  %v3167 = vmax.f32 %v3105, %v2777
  %v3168 = vmax.f32 %v3106, %v2781
  %v3169 = vmax.f32 %v3107, %v2780
  %v3170 = vmax.f32 %v3108, %v2784
  %v3171 = vmax.f32 %v3109, %v2783
  %v3172 = vmax.f32 %v3110, %v2787
  %v3173 = vmax.f32 %v3111, %v2786
  %v3174 = vmax.f32 %v3112, %v2790
  %v3175 = vmax.f32 %v3113, %v2789
  %v3176 = vmax.f32 %v3114, %v2793
  %v3177 = vmax.f32 %v3115, %v2792
  %v3178 = vmax.f32 %v3116, %v3148
  %v3179 = vmax.f32 %v3117, %v3147
  %v3180 = vmax.f32 %v3118, %v2799
  %v3181 = vmax.f32 %v3119, %v2798
  %v3182 = vmax.f32 %v3120, %v2802
  %v3183 = vmax.f32 %v3121, %v2801
  %v3184 = vmax.f32 %v3122, %v2805
  %v3185 = vmax.f32 %v3123, %v2804
  %v3186 = vmax.f32 %v3124, %v2808
  %v3187 = vmax.f32 %v3125, %v2807
  %v3188 = vmax.f32 %v3126, %v2811
  %v3189 = vmax.f32 %v3127, %v2810
  %v3190 = vmax.f32 %v3128, %v2814
  %v3191 = vmax.f32 %v3129, %v2813
  %v3192 = vmax.f32 %v3130, %v2817
  %v3193 = vmax.f32 %v3131, %v2816
  %v3194 = vmax.f32 %v3132, %v2820
  %v3195 = vmax.f32 %v3133, %v2819
  %v3196 = vmax.f32 %v3134, %v2823
  %v3197 = vmax.f32 %v3135, %v2822
  %v3198 = vmax.f32 %v3136, %v2826
  %v3199 = vmax.f32 %v3137, %v2825
  %v3200 = vmax.f32 %v3138, %v2829
  %v3201 = vmax.f32 %v3139, %v2828
  %v3202 = vmax.f32 %v3140, %v3151
  %v3203 = vmax.f32 %v3141, %v3150
  %v3204 = vrot.slane %v2678, 2
  %v3205 = vrot.slane %v2679, 2
  %v3206 = vsel %vm919, %v3204, %v3205
  %v3207 = vrot.slane %v2706, 2
  %v3208 = vrot.slane %v2707, 2
  %v3209 = vsel %vm919, %v3207, %v3208
  %v3214 = vmax.f32 %v3156, %v2931
  %v3215 = vmax.f32 %v3157, %v2930
  %v3216 = vmax.f32 %v3158, %v2934
  %v3217 = vmax.f32 %v3159, %v2933
  %v3218 = vmax.f32 %v3160, %v2937
  %v3219 = vmax.f32 %v3161, %v2936
  %v3220 = vmax.f32 %v3162, %v2940
  %v3221 = vmax.f32 %v3163, %v2939
  %v3222 = vmax.f32 %v3164, %v2943
  %v3223 = vmax.f32 %v3165, %v2942
  %v3224 = vmax.f32 %v3166, %v2946
  %v3225 = vmax.f32 %v3167, %v2945
  %v3226 = vmax.f32 %v3168, %v2949
  %v3227 = vmax.f32 %v3169, %v2948
  %v3228 = vmax.f32 %v3170, %v2952
  %v3229 = vmax.f32 %v3171, %v2951
  %v3230 = vmax.f32 %v3172, %v2955
  %v3231 = vmax.f32 %v3173, %v2954
  %v3232 = vmax.f32 %v3174, %v2958
  %v3233 = vmax.f32 %v3175, %v2957
  %v3234 = vmax.f32 %v3176, %v2961
  %v3235 = vmax.f32 %v3177, %v2960
  %v3236 = vmax.f32 %v3178, %v3206
  %v3237 = vmax.f32 %v3179, %v3205
  %v3238 = vmax.f32 %v3180, %v2967
  %v3239 = vmax.f32 %v3181, %v2966
  %v3240 = vmax.f32 %v3182, %v2970
  %v3241 = vmax.f32 %v3183, %v2969
  %v3242 = vmax.f32 %v3184, %v2973
  %v3243 = vmax.f32 %v3185, %v2972
  %v3244 = vmax.f32 %v3186, %v2976
  %v3245 = vmax.f32 %v3187, %v2975
  %v3246 = vmax.f32 %v3188, %v2979
  %v3247 = vmax.f32 %v3189, %v2978
  %v3248 = vmax.f32 %v3190, %v2982
  %v3249 = vmax.f32 %v3191, %v2981
  %v3250 = vmax.f32 %v3192, %v2985
  %v3251 = vmax.f32 %v3193, %v2984
  %v3252 = vmax.f32 %v3194, %v2988
  %v3253 = vmax.f32 %v3195, %v2987
  %v3254 = vmax.f32 %v3196, %v2991
  %v3255 = vmax.f32 %v3197, %v2990
  %v3256 = vmax.f32 %v3198, %v2994
  %v3257 = vmax.f32 %v3199, %v2993
  %v3258 = vmax.f32 %v3200, %v2997
  %v3259 = vmax.f32 %v3201, %v2996
  %v3260 = vmax.f32 %v3202, %v3209
  %v3261 = vmax.f32 %v3203, %v3208
  %v3262 = vmax.f32 %v3214, %v2658
  %v3263 = vmax.f32 %v3215, %v2659
  %v3264 = vmax.f32 %v3216, %v2660
  %v3265 = vmax.f32 %v3217, %v2661
  %v3266 = vmax.f32 %v3218, %v2662
  %v3267 = vmax.f32 %v3219, %v2663
  %v3268 = vmax.f32 %v3220, %v2664
  %v3269 = vmax.f32 %v3221, %v2665
  %v3270 = vmax.f32 %v3222, %v2666
  %v3271 = vmax.f32 %v3223, %v2667
  %v3272 = vmax.f32 %v3224, %v2668
  %v3273 = vmax.f32 %v3225, %v2669
  %v3274 = vmax.f32 %v3226, %v2670
  %v3275 = vmax.f32 %v3227, %v2671
  %v3276 = vmax.f32 %v3228, %v2672
  %v3277 = vmax.f32 %v3229, %v2673
  %v3278 = vmax.f32 %v3230, %v2674
  %v3279 = vmax.f32 %v3231, %v2675
  %v3280 = vmax.f32 %v3232, %v2676
  %v3281 = vmax.f32 %v3233, %v2677
  %v3282 = vmax.f32 %v3234, %v2678
  %v3283 = vmax.f32 %v3235, %v2679
  %v3284 = vmax.f32 %v3236, %v2680
  %v3285 = vmax.f32 %v3237, %v2681
  %v3286 = vmax.f32 %v3238, %v2686
  %v3287 = vmax.f32 %v3239, %v2687
  %v3288 = vmax.f32 %v3240, %v2688
  %v3289 = vmax.f32 %v3241, %v2689
  %v3290 = vmax.f32 %v3242, %v2690
  %v3291 = vmax.f32 %v3243, %v2691
  %v3292 = vmax.f32 %v3244, %v2692
  %v3293 = vmax.f32 %v3245, %v2693
  %v3294 = vmax.f32 %v3246, %v2694
  %v3295 = vmax.f32 %v3247, %v2695
  %v3296 = vmax.f32 %v3248, %v2696
  %v3297 = vmax.f32 %v3249, %v2697
  %v3298 = vmax.f32 %v3250, %v2698
  %v3299 = vmax.f32 %v3251, %v2699
  %v3300 = vmax.f32 %v3252, %v2700
  %v3301 = vmax.f32 %v3253, %v2701
  %v3302 = vmax.f32 %v3254, %v2702
  %v3303 = vmax.f32 %v3255, %v2703
  %v3304 = vmax.f32 %v3256, %v2704
  %v3305 = vmax.f32 %v3257, %v2705
  %v3306 = vmax.f32 %v3258, %v2706
  %v3307 = vmax.f32 %v3259, %v2707
  %v3308 = vmax.f32 %v3260, %v2708
  %v3309 = vmax.f32 %v3261, %v2709
  %v3314 = vrot.slane %v2680, 1
  %v3315 = vrot.slane %v2681, 1
  %v3316 = vsel %vm604, %v3314, %v3315
  %v3317 = vrot.slane %v2708, 1
  %v3318 = vrot.slane %v2709, 1
  %v3319 = vsel %vm604, %v3317, %v3318
  %v3324 = vmax.f32 %v3262, %v2766
  %v3325 = vmax.f32 %v3263, %v2765
  %v3326 = vmax.f32 %v3264, %v2769
  %v3327 = vmax.f32 %v3265, %v2768
  %v3328 = vmax.f32 %v3266, %v2772
  %v3329 = vmax.f32 %v3267, %v2771
  %v3330 = vmax.f32 %v3268, %v2775
  %v3331 = vmax.f32 %v3269, %v2774
  %v3332 = vmax.f32 %v3270, %v2778
  %v3333 = vmax.f32 %v3271, %v2777
  %v3334 = vmax.f32 %v3272, %v2781
  %v3335 = vmax.f32 %v3273, %v2780
  %v3336 = vmax.f32 %v3274, %v2784
  %v3337 = vmax.f32 %v3275, %v2783
  %v3338 = vmax.f32 %v3276, %v2787
  %v3339 = vmax.f32 %v3277, %v2786
  %v3340 = vmax.f32 %v3278, %v2790
  %v3341 = vmax.f32 %v3279, %v2789
  %v3342 = vmax.f32 %v3280, %v2793
  %v3343 = vmax.f32 %v3281, %v2792
  %v3344 = vmax.f32 %v3282, %v3148
  %v3345 = vmax.f32 %v3283, %v3147
  %v3346 = vmax.f32 %v3284, %v3316
  %v3347 = vmax.f32 %v3285, %v3315
  %v3348 = vmax.f32 %v3286, %v2802
  %v3349 = vmax.f32 %v3287, %v2801
  %v3350 = vmax.f32 %v3288, %v2805
  %v3351 = vmax.f32 %v3289, %v2804
  %v3352 = vmax.f32 %v3290, %v2808
  %v3353 = vmax.f32 %v3291, %v2807
  %v3354 = vmax.f32 %v3292, %v2811
  %v3355 = vmax.f32 %v3293, %v2810
  %v3356 = vmax.f32 %v3294, %v2814
  %v3357 = vmax.f32 %v3295, %v2813
  %v3358 = vmax.f32 %v3296, %v2817
  %v3359 = vmax.f32 %v3297, %v2816
  %v3360 = vmax.f32 %v3298, %v2820
  %v3361 = vmax.f32 %v3299, %v2819
  %v3362 = vmax.f32 %v3300, %v2823
  %v3363 = vmax.f32 %v3301, %v2822
  %v3364 = vmax.f32 %v3302, %v2826
  %v3365 = vmax.f32 %v3303, %v2825
  %v3366 = vmax.f32 %v3304, %v2829
  %v3367 = vmax.f32 %v3305, %v2828
  %v3368 = vmax.f32 %v3306, %v3151
  %v3369 = vmax.f32 %v3307, %v3150
  %v3370 = vmax.f32 %v3308, %v3319
  %v3371 = vmax.f32 %v3309, %v3318
  %v3372 = vrot.slane %v2680, 2
  %v3373 = vrot.slane %v2681, 2
  %v3374 = vsel %vm919, %v3372, %v3373
  %v3375 = vrot.slane %v2708, 2
  %v3376 = vrot.slane %v2709, 2
  %v3377 = vsel %vm919, %v3375, %v3376
  %v3382 = vmax.f32 %v3324, %v2934
  %v3383 = vmax.f32 %v3325, %v2933
  %v3384 = vmax.f32 %v3326, %v2937
  %v3385 = vmax.f32 %v3327, %v2936
  %v3386 = vmax.f32 %v3328, %v2940
  %v3387 = vmax.f32 %v3329, %v2939
  %v3388 = vmax.f32 %v3330, %v2943
  %v3389 = vmax.f32 %v3331, %v2942
  %v3390 = vmax.f32 %v3332, %v2946
  %v3391 = vmax.f32 %v3333, %v2945
  %v3392 = vmax.f32 %v3334, %v2949
  %v3393 = vmax.f32 %v3335, %v2948
  %v3394 = vmax.f32 %v3336, %v2952
  %v3395 = vmax.f32 %v3337, %v2951
  %v3396 = vmax.f32 %v3338, %v2955
  %v3397 = vmax.f32 %v3339, %v2954
  %v3398 = vmax.f32 %v3340, %v2958
  %v3399 = vmax.f32 %v3341, %v2957
  %v3400 = vmax.f32 %v3342, %v2961
  %v3401 = vmax.f32 %v3343, %v2960
  %v3402 = vmax.f32 %v3344, %v3206
  %v3403 = vmax.f32 %v3345, %v3205
  %v3404 = vmax.f32 %v3346, %v3374
  %v3405 = vmax.f32 %v3347, %v3373
  %v3406 = vmax.f32 %v3348, %v2970
  %v3407 = vmax.f32 %v3349, %v2969
  %v3408 = vmax.f32 %v3350, %v2973
  %v3409 = vmax.f32 %v3351, %v2972
  %v3410 = vmax.f32 %v3352, %v2976
  %v3411 = vmax.f32 %v3353, %v2975
  %v3412 = vmax.f32 %v3354, %v2979
  %v3413 = vmax.f32 %v3355, %v2978
  %v3414 = vmax.f32 %v3356, %v2982
  %v3415 = vmax.f32 %v3357, %v2981
  %v3416 = vmax.f32 %v3358, %v2985
  %v3417 = vmax.f32 %v3359, %v2984
  %v3418 = vmax.f32 %v3360, %v2988
  %v3419 = vmax.f32 %v3361, %v2987
  %v3420 = vmax.f32 %v3362, %v2991
  %v3421 = vmax.f32 %v3363, %v2990
  %v3422 = vmax.f32 %v3364, %v2994
  %v3423 = vmax.f32 %v3365, %v2993
  %v3424 = vmax.f32 %v3366, %v2997
  %v3425 = vmax.f32 %v3367, %v2996
  %v3426 = vmax.f32 %v3368, %v3209
  %v3427 = vmax.f32 %v3369, %v3208
  %v3428 = vmax.f32 %v3370, %v3377
  %v3429 = vmax.f32 %v3371, %v3376
  %vm3430 = vcmask 130048
  %3431 = vst.msk [vmem:[%s3] sm:$0xff] %vm3430, %v3382
  %vm3432 = vcmask 125952
  %3433 = vst.msk [vmem:[%s3 + $0x8] sm:$0xf] %vm3432, %v3383
  %3434 = vst.msk [vmem:[%s3 + $0x10] sm:$0xff] %vm3430, %v3384
  %3435 = vst.msk [vmem:[%s3 + $0x18] sm:$0xf] %vm3432, %v3385
  %3436 = vst.msk [vmem:[%s3 + $0x20] sm:$0xff] %vm3430, %v3386
  %3437 = vst.msk [vmem:[%s3 + $0x28] sm:$0xf] %vm3432, %v3387
  %3438 = vst.msk [vmem:[%s3 + $0x30] sm:$0xff] %vm3430, %v3388
  %3439 = vst.msk [vmem:[%s3 + $0x38] sm:$0xf] %vm3432, %v3389
  %3440 = vst.msk [vmem:[%s3 + $0x40] sm:$0xff] %vm3430, %v3390
  %3441 = vst.msk [vmem:[%s3 + $0x48] sm:$0xf] %vm3432, %v3391
  %3442 = vst.msk [vmem:[%s3 + $0x50] sm:$0xff] %vm3430, %v3392
  %3443 = vst.msk [vmem:[%s3 + $0x58] sm:$0xf] %vm3432, %v3393
  %3444 = vst.msk [vmem:[%s3 + $0x60] sm:$0xff] %vm3430, %v3394
  %3445 = vst.msk [vmem:[%s3 + $0x68] sm:$0xf] %vm3432, %v3395
  %3446 = vst.msk [vmem:[%s3 + $0x70] sm:$0xff] %vm3430, %v3396
  %3447 = vst.msk [vmem:[%s3 + $0x78] sm:$0xf] %vm3432, %v3397
  %3448 = vst.msk [vmem:[%s3 + $0x80] sm:$0xff] %vm3430, %v3398
  %3449 = vst.msk [vmem:[%s3 + $0x88] sm:$0xf] %vm3432, %v3399
  %3450 = vst.msk [vmem:[%s3 + $0x90] sm:$0xff] %vm3430, %v3400
  %3451 = vst.msk [vmem:[%s3 + $0x98] sm:$0xf] %vm3432, %v3401
  %3452 = vst.msk [vmem:[%s3 + $0xa0] sm:$0xff] %vm3430, %v3402
  %3453 = vst.msk [vmem:[%s3 + $0xa8] sm:$0xf] %vm3432, %v3403
  %3454 = vst.msk [vmem:[%s3 + $0xb0] sm:$0xff] %vm3430, %v3404
  %3455 = vst.msk [vmem:[%s3 + $0xb8] sm:$0xf] %vm3432, %v3405
  %3456 = vst.msk [vmem:[%s3 + $0xc0] sm:$0xff] %vm3430, %v3406
  %3457 = vst.msk [vmem:[%s3 + $0xc8] sm:$0xf] %vm3432, %v3407
  %3458 = vst.msk [vmem:[%s3 + $0xd0] sm:$0xff] %vm3430, %v3408
  %3459 = vst.msk [vmem:[%s3 + $0xd8] sm:$0xf] %vm3432, %v3409
  %3460 = vst.msk [vmem:[%s3 + $0xe0] sm:$0xff] %vm3430, %v3410
  %3461 = vst.msk [vmem:[%s3 + $0xe8] sm:$0xf] %vm3432, %v3411
  %3462 = vst.msk [vmem:[%s3 + $0xf0] sm:$0xff] %vm3430, %v3412
  %3463 = vst.msk [vmem:[%s3 + $0xf8] sm:$0xf] %vm3432, %v3413
  %3464 = vst.msk [vmem:[%s3 + $0x100] sm:$0xff] %vm3430, %v3414
  %3465 = vst.msk [vmem:[%s3 + $0x108] sm:$0xf] %vm3432, %v3415
  %3466 = vst.msk [vmem:[%s3 + $0x110] sm:$0xff] %vm3430, %v3416
  %3467 = vst.msk [vmem:[%s3 + $0x118] sm:$0xf] %vm3432, %v3417
  %3468 = vst.msk [vmem:[%s3 + $0x120] sm:$0xff] %vm3430, %v3418
  %3469 = vst.msk [vmem:[%s3 + $0x128] sm:$0xf] %vm3432, %v3419
  %3470 = vst.msk [vmem:[%s3 + $0x130] sm:$0xff] %vm3430, %v3420
  %3471 = vst.msk [vmem:[%s3 + $0x138] sm:$0xf] %vm3432, %v3421
  %3472 = vst.msk [vmem:[%s3 + $0x140] sm:$0xff] %vm3430, %v3422
  %3473 = vst.msk [vmem:[%s3 + $0x148] sm:$0xf] %vm3432, %v3423
  %3474 = vst.msk [vmem:[%s3 + $0x150] sm:$0xff] %vm3430, %v3424
  %3475 = vst.msk [vmem:[%s3 + $0x158] sm:$0xf] %vm3432, %v3425
  %3476 = vst.msk [vmem:[%s3 + $0x160] sm:$0xff] %vm3430, %v3426
  %3477 = vst.msk [vmem:[%s3 + $0x168] sm:$0xf] %vm3432, %v3427
  %3478 = vst.msk [vmem:[%s3 + $0x170] sm:$0xff] %vm3430, %v3428
  %3479 = vst.msk [vmem:[%s3 + $0x178] sm:$0xf] %vm3432, %v3429
  // Predicated region
  $region14: #{pneumonia_forward.1} parent=0 // pred_check
    _
  $region15: #{pneumonia_forward.1} parent=0 // pred_check_branch
    %3481 = sbr.rel (0) target = $region17
  $region16: #{pneumonia_forward.1} parent=0 // pred_region
    _
  $region17: #{pneumonia_forward.1} parent=0 // pred_fallthru
    _
  // Predicated region
  $region18: #{pneumonia_forward.1} parent=0 // pred_check
    _
  $region19: #{pneumonia_forward.1} parent=0 // pred_check_branch
    %3483 = sbr.rel (0) target = $region21
  $region20: #{pneumonia_forward.1} parent=0 // pred_region
    _
  $region21: #{pneumonia_forward.1} parent=0 // pred_fallthru
    _

</llo_original>
